<compile_context>
chip_gen: v5e
topology: v5e:2x2
jax: 0.10.0
libtpu: 0.0.40
codegen_flags: <defaults>
</compile_context>

<pallas_src>
import functools

import jax
import jax.numpy as jnp
from jax import lax
from jax.experimental import pallas as pl
from jax.experimental.pallas import tpu as pltpu

LANE = 128


def _round_up(x, m):
    return (x + m - 1) // m * m


def _sigmoid(x):
    # tanh-based sigmoid: single EUP transcendental, no VALU divide.
    return 0.5 * (jnp.tanh(0.5 * x) + 1.0)


def _gate_math(gates, c, Hp):
    """gates: (B, 4*Hp) f32, PyTorch order [i,f,g,o]; every slice is 128-lane aligned."""
    i_g = _sigmoid(gates[:, 0 * Hp:1 * Hp])
    f_g = _sigmoid(gates[:, 1 * Hp:2 * Hp])
    g_g = jnp.tanh(gates[:, 2 * Hp:3 * Hp])
    o_g = _sigmoid(gates[:, 3 * Hp:4 * Hp])
    c_new = f_g * c + i_g * g_g
    h_new = o_g * jnp.tanh(c_new)
    return h_new, c_new


def lstm_kernel(x_ref, wih0_ref, whh0_ref, b0_ref, wih1_ref, whh1_ref, b1_ref,
                wlin_ref, blin_ref, out_ref,
                h0_ref, c0_ref, h1_ref, c1_ref, h0seq_ref,
                *, chunk, batch, hidden_pad, output_dim):
    """One time-chunk of the 2-layer LSTM; state carried in VMEM scratch across grid steps.

    x_ref:    (chunk*B, D)            f32     (time-flattened chunk)
    wih0_ref: (D,  4Hp)   whh0_ref: (Hp, 4Hp)   b0_ref: (1, 4Hp) f32
    wih1_ref: (Hp, 4Hp)   whh1_ref: (Hp, 4Hp)   b1_ref: (1, 4Hp) f32
    wlin_ref: (Hp, Op)    blin_ref: (1, Op)  f32
    out_ref:  (B, Op)                 f32     (lane-dense log-softmax, written on last step)
    scratch:  h0/c0/h1/c1 (B, Hp) f32, h0seq (chunk*B, Hp) f32
    """
    Hp = hidden_pad
    B = batch
    t = pl.program_id(0)
    nt = pl.num_programs(0)
    wdt = wih0_ref.dtype

    @pl.when(t == 0)
    def _init():
        zeros = jnp.zeros((B, Hp), jnp.float32)
        h0_ref[...] = zeros
        c0_ref[...] = zeros
        h1_ref[...] = zeros
        c1_ref[...] = zeros

    # ---- Layer 0: hoisted input projection for the whole chunk (one big M=chunk*B matmul).
    x_all = x_ref[...].astype(wdt)                                     # (chunk*B, D)
    g0x = jnp.dot(x_all, wih0_ref[...], preferred_element_type=jnp.float32)
    g0x = g0x + b0_ref[...]                                            # bias folded once

    # ---- Layer 0 recurrence: only h @ Whh0 on the serial path; fully unrolled.
    whh0 = whh0_ref[...]
    h0 = h0_ref[...]
    c0 = c0_ref[...]
    for i in range(chunk):
        gates = g0x[i * B:(i + 1) * B, :] + jnp.dot(
            h0.astype(wdt), whh0, preferred_element_type=jnp.float32)
        h0, c0 = _gate_math(gates, c0, Hp)
        h0seq_ref[i * B:(i + 1) * B, :] = h0
    h0_ref[...] = h0
    c0_ref[...] = c0

    # ---- Layer 1: hoisted input projection over the chunk of layer-0 outputs.
    g1x = jnp.dot(h0seq_ref[...].astype(wdt), wih1_ref[...],
                  preferred_element_type=jnp.float32)
    g1x = g1x + b1_ref[...]

    whh1 = whh1_ref[...]
    h1 = h1_ref[...]
    c1 = c1_ref[...]
    for i in range(chunk):
        gates = g1x[i * B:(i + 1) * B, :] + jnp.dot(
            h1.astype(wdt), whh1, preferred_element_type=jnp.float32)
        h1, c1 = _gate_math(gates, c1, Hp)
    h1_ref[...] = h1
    c1_ref[...] = c1

    # ---- Epilogue on the last grid step: Linear + lane-masked, lane-dense log_softmax.
    @pl.when(t == nt - 1)
    def _final():
        logits = jnp.dot(h1.astype(wdt), wlin_ref[...],
                         preferred_element_type=jnp.float32) + blin_ref[...]   # (B, Op)
        col = lax.broadcasted_iota(jnp.int32, logits.shape, 1)
        logits = jnp.where(col < output_dim, logits, -1e30)        # mask padded classes
        m = jnp.max(logits, axis=1, keepdims=True)
        shifted = logits - m
        lse = jnp.log(jnp.sum(jnp.exp(shifted), axis=1, keepdims=True))
        out_ref[...] = shifted - lse


# ----------------------------- wrapper-side helpers -----------------------------

def _pad_gate_cols(w, H, Hp):
    """(..., 4H) -> (..., 4Hp): each gate block zero-padded on the right (lane-aligned)."""
    if Hp == H:
        return w
    parts = []
    for k in range(4):
        g = w[..., k * H:(k + 1) * H]
        parts.append(jnp.pad(g, [(0, 0)] * (w.ndim - 1) + [(0, Hp - H)]))
    return jnp.concatenate(parts, axis=-1)


def _pad_rows(w, H, Hp):
    if Hp == H:
        return w
    return jnp.pad(w, [(0, Hp - H)] + [(0, 0)] * (w.ndim - 1))


def _pick_time_chunk(T, B, max_chunk):
    """Largest divisor c of T with c <= max_chunk and (c*B) % 8 == 0 (sublane-legal block).
    Falls back to c = T (whole sequence resident; block == full array is always legal)."""
    for c in range(min(T, max_chunk), 0, -1):
        if T % c == 0 and (c * B) % 8 == 0:
            return c
    return T


def _const_index_map(ndim):
    return lambda t: (0,) * ndim


def lstm_forward(x, params, *, hidden_dim, output_dim,
                 weight_dtype=jnp.bfloat16, max_time_chunk=32):
    """x: (T, B, D) f32 -> (B, output_dim) f32 log-softmax scores (matches PyTorch module)."""
    T, B, D = x.shape
    H = hidden_dim
    Hp = _round_up(max(H, 1), LANE)
    Op = _round_up(max(output_dim, 1), LANE)
    chunk = _pick_time_chunk(T, B, max_time_chunk)
    n_steps = T // chunk
    f32 = jnp.float32

    # Pad gate columns / hidden rows to 128-lane-aligned blocks (padded lanes stay exactly 0);
    # weight matrices cast to `weight_dtype` (bf16 default) for the MXU, biases stay f32.
    wih0 = _pad_gate_cols(params["wih0"].astype(f32), H, Hp).astype(weight_dtype)
    whh0 = _pad_gate_cols(_pad_rows(params["whh0"].astype(f32), H, Hp), H, Hp).astype(weight_dtype)
    b0 = _pad_gate_cols(params["b0"].astype(f32), H, Hp)
    wih1 = _pad_gate_cols(_pad_rows(params["wih1"].astype(f32), H, Hp), H, Hp).astype(weight_dtype)
    whh1 = _pad_gate_cols(_pad_rows(params["whh1"].astype(f32), H, Hp), H, Hp).astype(weight_dtype)
    b1 = _pad_gate_cols(params["b1"].astype(f32), H, Hp)
    wlin = jnp.pad(params["wlin"].astype(f32),
                   [(0, Hp - H), (0, Op - output_dim)]).astype(weight_dtype)
    blin = jnp.pad(params["blin"].astype(f32), [(0, 0), (0, Op - output_dim)])
    weights = (wih0, whh0, b0, wih1, whh1, b1, wlin, blin)

    # Time-flattened x so each grid step gets a (chunk*B, D) slab with no in-kernel reshape.
    x_flat = x.reshape(T * B, D).astype(f32)

    kernel = functools.partial(lstm_kernel, chunk=chunk, batch=B,
                               hidden_pad=Hp, output_dim=output_dim)

    in_specs = [pl.BlockSpec((chunk * B, D), lambda t: (t, 0))]
    for w in weights:
        # Full-array resident block; constant index_map -> DMA'd once, never re-fetched.
        in_specs.append(pl.BlockSpec(w.shape, _const_index_map(w.ndim)))
    out_spec = pl.BlockSpec((B, Op), lambda t: (0, 0))

    # VMEM budget: 2x-buffered x slab + resident weights + state/h0seq scratch + out
    # + chunk-local intermediates (g0x, g1x).
    w_bytes = sum(int(w.size) * jnp.dtype(w.dtype).itemsize for w in weights)
    x_bytes = 2 * chunk * B * D * 4
    state_bytes = 4 * B * Hp * 4 + chunk * B * Hp * 4
    interm_bytes = 2 * chunk * B * 4 * Hp * 4
    out_bytes = B * Op * 4
    est = w_bytes + x_bytes + state_bytes + interm_bytes + out_bytes
    vmem_limit = int(min(max(4 * est, 16 * 2 ** 20), 48 * 2 ** 20))

    flops = 2 * T * B * (D * 4 * Hp + 3 * Hp * 4 * Hp) + 2 * B * Hp * Op
    cost = pl.CostEstimate(
        flops=int(flops),
        transcendentals=int(12 * T * B * Hp + B * Op),
        bytes_accessed=int(T * B * D * 4 + w_bytes + out_bytes),
    )

    # TODO(synk): for large production batches add a leading "parallel" batch grid axis
    # (dimension_semantics=("parallel", "arbitrary")) to use both v7x TensorCores.
    out_padded = pl.pallas_call(
        kernel,
        out_shape=jax.ShapeDtypeStruct((B, Op), jnp.float32),
        grid=(n_steps,),
        in_specs=in_specs,
        out_specs=out_spec,
        scratch_shapes=[pltpu.VMEM((B, Hp), jnp.float32)] * 4
                       + [pltpu.VMEM((chunk * B, Hp), jnp.float32)],
        compiler_params=pltpu.CompilerParams(
            dimension_semantics=("arbitrary",),      # sequential recurrence over time chunks
            vmem_limit_bytes=vmem_limit,
        ),
        cost_estimate=cost,
    )(x_flat, *weights)

    return out_padded[:, :output_dim]


# ----------------------------- params / reference -----------------------------

def init_params(key, input_dim, hidden_dim, output_dim):
    """Deterministic init mimicking PyTorch's uniform(-1/sqrt(H), 1/sqrt(H))."""
    H = hidden_dim
    k = 1.0 / jnp.sqrt(jnp.float32(H))
    keys = jax.random.split(key, 12)

    def u(k_, shape):
        return jax.random.uniform(k_, shape, jnp.float32, -k, k)

    wih0 = u(keys[0], (input_dim, 4 * H))
    whh0 = u(keys[1], (H, 4 * H))
    b0 = u(keys[2], (1, 4 * H)) + u(keys[3], (1, 4 * H))   # b_ih + b_hh
    wih1 = u(keys[4], (H, 4 * H))
    whh1 = u(keys[5], (H, 4 * H))
    b1 = u(keys[6], (1, 4 * H)) + u(keys[7], (1, 4 * H))
    wlin = jax.random.uniform(keys[8], (H, output_dim), jnp.float32, -k, k)
    blin = jax.random.uniform(keys[9], (1, output_dim), jnp.float32, -k, k)
    return dict(wih0=wih0, whh0=whh0, b0=b0,
                wih1=wih1, whh1=whh1, b1=b1,
                wlin=wlin, blin=blin)


def reference_forward(x, params, *, hidden_dim, output_dim):
    """Pure-JAX reference with identical semantics (for sanity check)."""
    H = hidden_dim
    T, B, D = x.shape

    def cell(x_t, h, c, wih, whh, b):
        g = x_t @ wih + h @ whh + b
        i = jax.nn.sigmoid(g[:, :H])
        f = jax.nn.sigmoid(g[:, H:2 * H])
        gg = jnp.tanh(g[:, 2 * H:3 * H])
        o = jax.nn.sigmoid(g[:, 3 * H:])
        c = f * c + i * gg
        h = o * jnp.tanh(c)
        return h, c

    h0 = c0 = h1 = c1 = jnp.zeros((B, H), jnp.float32)
    for t in range(T):
        h0, c0 = cell(x[t], h0, c0, params["wih0"], params["whh0"], params["b0"])
        h1, c1 = cell(h0, h1, c1, params["wih1"], params["whh1"], params["b1"])
    logits = h1 @ params["wlin"] + params["blin"]
    return jax.nn.log_softmax(logits, axis=1)


if __name__ == "__main__":
    # Shapes consistent with the module's forward(): input (seq_len, batch, input_dim).
    seq_len, batch, input_dim = 8, 2, 16
    hidden_dim, output_dim = 32, 3

    key = jax.random.PRNGKey(0)
    kx, kp = jax.random.split(key)
    x = jax.random.normal(kx, (seq_len, batch, input_dim), jnp.float32)
    params = init_params(kp, input_dim, hidden_dim, output_dim)

    # max_time_chunk=4 -> grid of 2 time chunks, exercising state carry across grid steps.
    # 1) f32 weights: tight check against the pure-JAX reference.
    out_f32 = jax.block_until_ready(
        lstm_forward(x, params, hidden_dim=hidden_dim, output_dim=output_dim,
                     weight_dtype=jnp.float32, max_time_chunk=4))
    ref = reference_forward(x, params, hidden_dim=hidden_dim, output_dim=output_dim)
    assert out_f32.shape == (batch, output_dim)
    assert bool(jnp.all(jnp.isfinite(out_f32)))
    assert jnp.allclose(out_f32, ref, atol=5e-4, rtol=2e-3)

    # 2) bf16 weights (v6e/v7x MXU path; gate math stays f32): compare against a reference
    #    that uses the same bf16-rounded weight values.
    out_bf16 = jax.block_until_ready(
        lstm_forward(x, params, hidden_dim=hidden_dim, output_dim=output_dim,
                     weight_dtype=jnp.bfloat16, max_time_chunk=4))
    params_q = {k: (v.astype(jnp.bfloat16).astype(jnp.float32) if k.startswith("w") else v)
                for k, v in params.items()}
    ref_q = reference_forward(x, params_q, hidden_dim=hidden_dim, output_dim=output_dim)
    assert out_bf16.shape == (batch, output_dim)
    assert bool(jnp.all(jnp.isfinite(out_bf16)))
    assert jnp.allclose(out_bf16, ref_q, atol=5e-2, rtol=5e-2)

    print("KERNEL_OK")
</pallas_src>

<mosaic_0001>
module attributes {stable_mosaic.version = 11 : i64} {
  func.func @lstm_kernel(%arg0: i32, %arg1: memref<8x16xf32, #tpu.memory_space<vmem>>, %arg2: memref<16x512xf32, #tpu.memory_space<vmem>>, %arg3: memref<128x512xf32, #tpu.memory_space<vmem>>, %arg4: memref<1x512xf32, #tpu.memory_space<vmem>>, %arg5: memref<128x512xf32, #tpu.memory_space<vmem>>, %arg6: memref<128x512xf32, #tpu.memory_space<vmem>>, %arg7: memref<1x512xf32, #tpu.memory_space<vmem>>, %arg8: memref<128x128xf32, #tpu.memory_space<vmem>>, %arg9: memref<1x128xf32, #tpu.memory_space<vmem>>, %arg10: memref<2x128xf32, #tpu.memory_space<vmem>>, %arg11: memref<2x128xf32, #tpu.memory_space<vmem>>, %arg12: memref<2x128xf32, #tpu.memory_space<vmem>>, %arg13: memref<2x128xf32, #tpu.memory_space<vmem>>, %arg14: memref<2x128xf32, #tpu.memory_space<vmem>>, %arg15: memref<8x128xf32, #tpu.memory_space<vmem>>) attributes {dimension_semantics = [#tpu.dimension_semantics<arbitrary>], iteration_bounds = array<i64: 2>, scalar_prefetch = 0 : i64, scratch_operands = 5 : i64, tpu.core_type = #tpu.core_type<tc>, window_params = [{transform_indices = @transform_0, window_bounds = array<i64: 8, 16>}, {pipeline_mode = #tpu.pipeline_mode<synchronous>, transform_indices = @transform_1, window_bounds = array<i64: 16, 512>}, {pipeline_mode = #tpu.pipeline_mode<synchronous>, transform_indices = @transform_2, window_bounds = array<i64: 128, 512>}, {pipeline_mode = #tpu.pipeline_mode<synchronous>, transform_indices = @transform_3, window_bounds = array<i64: 1, 512>}, {pipeline_mode = #tpu.pipeline_mode<synchronous>, transform_indices = @transform_4, window_bounds = array<i64: 128, 512>}, {pipeline_mode = #tpu.pipeline_mode<synchronous>, transform_indices = @transform_5, window_bounds = array<i64: 128, 512>}, {pipeline_mode = #tpu.pipeline_mode<synchronous>, transform_indices = @transform_6, window_bounds = array<i64: 1, 512>}, {pipeline_mode = #tpu.pipeline_mode<synchronous>, transform_indices = @transform_7, window_bounds = array<i64: 128, 128>}, {pipeline_mode = #tpu.pipeline_mode<synchronous>, transform_indices = @transform_8, window_bounds = array<i64: 1, 128>}, {pipeline_mode = #tpu.pipeline_mode<synchronous>, transform_indices = @transform_9, window_bounds = array<i64: 2, 128>}]} {
    %c0_i32 = arith.constant 0 : i32
    %0 = arith.cmpi eq, %arg0, %c0_i32 : i32
    %1 = arith.extui %0 : i1 to i32
    %c0_i32_0 = arith.constant 0 : i32
    %2 = arith.cmpi ne, %1, %c0_i32_0 : i32
    scf.if %2 {
      %cst_119 = arith.constant 0.000000e+00 : f32
      %304 = vector.broadcast %cst_119 : f32 to vector<2x128xf32>
      %c0_120 = arith.constant 0 : index
      %c0_121 = arith.constant 0 : index
      %305 = vector.load %arg11[%c0_120, %c0_121] : memref<2x128xf32, #tpu.memory_space<vmem>>, vector<2x128xf32>
      tpu.vector_store %arg11[%c0_120, %c0_121], %304 {strides = array<i32>} : memref<2x128xf32, #tpu.memory_space<vmem>>, vector<2x128xf32>,
      %c0_122 = arith.constant 0 : index
      %c0_123 = arith.constant 0 : index
      %306 = vector.load %arg12[%c0_122, %c0_123] : memref<2x128xf32, #tpu.memory_space<vmem>>, vector<2x128xf32>
      tpu.vector_store %arg12[%c0_122, %c0_123], %304 {strides = array<i32>} : memref<2x128xf32, #tpu.memory_space<vmem>>, vector<2x128xf32>,
      %c0_124 = arith.constant 0 : index
      %c0_125 = arith.constant 0 : index
      %307 = vector.load %arg13[%c0_124, %c0_125] : memref<2x128xf32, #tpu.memory_space<vmem>>, vector<2x128xf32>
      tpu.vector_store %arg13[%c0_124, %c0_125], %304 {strides = array<i32>} : memref<2x128xf32, #tpu.memory_space<vmem>>, vector<2x128xf32>,
      %c0_126 = arith.constant 0 : index
      %c0_127 = arith.constant 0 : index
      %308 = vector.load %arg14[%c0_126, %c0_127] : memref<2x128xf32, #tpu.memory_space<vmem>>, vector<2x128xf32>
      tpu.vector_store %arg14[%c0_126, %c0_127], %304 {strides = array<i32>} : memref<2x128xf32, #tpu.memory_space<vmem>>, vector<2x128xf32>,
    } else {
    }
    %c0 = arith.constant 0 : index
    %c0_1 = arith.constant 0 : index
    %3 = vector.load %arg1[%c0, %c0_1] : memref<8x16xf32, #tpu.memory_space<vmem>>, vector<8x16xf32>
    %c0_2 = arith.constant 0 : index
    %c0_3 = arith.constant 0 : index
    %4 = vector.load %arg2[%c0_2, %c0_3] : memref<16x512xf32, #tpu.memory_space<vmem>>, vector<16x512xf32>
    %cst = arith.constant dense<0.000000e+00> : vector<8x512xf32>
    %5 = tpu.matmul %3, %4, %cst {dimension_numbers = #tpu.dot_dimension_numbers<[1], [0], [0], [1], [0, 0, 1, 1], [], []>} : vector<8x16xf32>, vector<16x512xf32>, vector<8x512xf32> -> vector<8x512xf32>
    %c0_4 = arith.constant 0 : index
    %c0_5 = arith.constant 0 : index
    %6 = vector.load %arg4[%c0_4, %c0_5] : memref<1x512xf32, #tpu.memory_space<vmem>>, vector<1x512xf32>
    %7 = vector.broadcast %6 : vector<1x512xf32> to vector<8x512xf32>
    %8 = arith.addf %5, %7 : vector<8x512xf32>
    %c0_6 = arith.constant 0 : index
    %c0_7 = arith.constant 0 : index
    %9 = vector.load %arg3[%c0_6, %c0_7] : memref<128x512xf32, #tpu.memory_space<vmem>>, vector<128x512xf32>
    %c0_8 = arith.constant 0 : index
    %c0_9 = arith.constant 0 : index
    %10 = vector.load %arg11[%c0_8, %c0_9] : memref<2x128xf32, #tpu.memory_space<vmem>>, vector<2x128xf32>
    %c0_10 = arith.constant 0 : index
    %c0_11 = arith.constant 0 : index
    %11 = vector.load %arg12[%c0_10, %c0_11] : memref<2x128xf32, #tpu.memory_space<vmem>>, vector<2x128xf32>
    %12 = vector.extract_strided_slice %8 {offsets = [0, 0], sizes = [2, 512], strides = [1, 1]} : vector<8x512xf32> to vector<2x512xf32>
    %cst_12 = arith.constant dense<0.000000e+00> : vector<2x512xf32>
    %13 = tpu.matmul %10, %9, %cst_12 {dimension_numbers = #tpu.dot_dimension_numbers<[1], [0], [0], [1], [0, 0, 1, 1], [], []>} : vector<2x128xf32>, vector<128x512xf32>, vector<2x512xf32> -> vector<2x512xf32>
    %14 = arith.addf %12, %13 : vector<2x512xf32>
    %15 = vector.extract_strided_slice %14 {offsets = [0, 0], sizes = [2, 128], strides = [1, 1]} : vector<2x512xf32> to vector<2x128xf32>
    %cst_13 = arith.constant 5.000000e-01 : f32
    %16 = vector.broadcast %cst_13 : f32 to vector<2x128xf32>
    %17 = arith.mulf %16, %15 : vector<2x128xf32>
    %18 = math.tanh %17 : vector<2x128xf32>
    %cst_14 = arith.constant 1.000000e+00 : f32
    %19 = vector.broadcast %cst_14 : f32 to vector<2x128xf32>
    %20 = arith.addf %18, %19 : vector<2x128xf32>
    %cst_15 = arith.constant 5.000000e-01 : f32
    %21 = vector.broadcast %cst_15 : f32 to vector<2x128xf32>
    %22 = arith.mulf %21, %20 : vector<2x128xf32>
    %23 = vector.extract_strided_slice %14 {offsets = [0, 128], sizes = [2, 128], strides = [1, 1]} : vector<2x512xf32> to vector<2x128xf32>
    %cst_16 = arith.constant 5.000000e-01 : f32
    %24 = vector.broadcast %cst_16 : f32 to vector<2x128xf32>
    %25 = arith.mulf %24, %23 : vector<2x128xf32>
    %26 = math.tanh %25 : vector<2x128xf32>
    %cst_17 = arith.constant 1.000000e+00 : f32
    %27 = vector.broadcast %cst_17 : f32 to vector<2x128xf32>
    %28 = arith.addf %26, %27 : vector<2x128xf32>
    %cst_18 = arith.constant 5.000000e-01 : f32
    %29 = vector.broadcast %cst_18 : f32 to vector<2x128xf32>
    %30 = arith.mulf %29, %28 : vector<2x128xf32>
    %31 = vector.extract_strided_slice %14 {offsets = [0, 256], sizes = [2, 128], strides = [1, 1]} : vector<2x512xf32> to vector<2x128xf32>
    %32 = math.tanh %31 : vector<2x128xf32>
    %33 = vector.extract_strided_slice %14 {offsets = [0, 384], sizes = [2, 128], strides = [1, 1]} : vector<2x512xf32> to vector<2x128xf32>
    %cst_19 = arith.constant 5.000000e-01 : f32
    %34 = vector.broadcast %cst_19 : f32 to vector<2x128xf32>
    %35 = arith.mulf %34, %33 : vector<2x128xf32>
    %36 = math.tanh %35 : vector<2x128xf32>
    %cst_20 = arith.constant 1.000000e+00 : f32
    %37 = vector.broadcast %cst_20 : f32 to vector<2x128xf32>
    %38 = arith.addf %36, %37 : vector<2x128xf32>
    %cst_21 = arith.constant 5.000000e-01 : f32
    %39 = vector.broadcast %cst_21 : f32 to vector<2x128xf32>
    %40 = arith.mulf %39, %38 : vector<2x128xf32>
    %41 = arith.mulf %30, %11 : vector<2x128xf32>
    %42 = arith.mulf %22, %32 : vector<2x128xf32>
    %43 = arith.addf %41, %42 : vector<2x128xf32>
    %44 = math.tanh %43 : vector<2x128xf32>
    %45 = arith.mulf %40, %44 : vector<2x128xf32>
    %c0_22 = arith.constant 0 : index
    %c0_23 = arith.constant 0 : index
    %46 = vector.load %arg15[%c0_22, %c0_23] : memref<8x128xf32, #tpu.memory_space<vmem>>, vector<2x128xf32>
    tpu.vector_store %arg15[%c0_22, %c0_23], %45 {strides = array<i32>} : memref<8x128xf32, #tpu.memory_space<vmem>>, vector<2x128xf32>,
    %47 = vector.extract_strided_slice %8 {offsets = [2, 0], sizes = [2, 512], strides = [1, 1]} : vector<8x512xf32> to vector<2x512xf32>
    %cst_24 = arith.constant dense<0.000000e+00> : vector<2x512xf32>
    %48 = tpu.matmul %45, %9, %cst_24 {dimension_numbers = #tpu.dot_dimension_numbers<[1], [0], [0], [1], [0, 0, 1, 1], [], []>} : vector<2x128xf32>, vector<128x512xf32>, vector<2x512xf32> -> vector<2x512xf32>
    %49 = arith.addf %47, %48 : vector<2x512xf32>
    %50 = vector.extract_strided_slice %49 {offsets = [0, 0], sizes = [2, 128], strides = [1, 1]} : vector<2x512xf32> to vector<2x128xf32>
    %cst_25 = arith.constant 5.000000e-01 : f32
    %51 = vector.broadcast %cst_25 : f32 to vector<2x128xf32>
    %52 = arith.mulf %51, %50 : vector<2x128xf32>
    %53 = math.tanh %52 : vector<2x128xf32>
    %cst_26 = arith.constant 1.000000e+00 : f32
    %54 = vector.broadcast %cst_26 : f32 to vector<2x128xf32>
    %55 = arith.addf %53, %54 : vector<2x128xf32>
    %cst_27 = arith.constant 5.000000e-01 : f32
    %56 = vector.broadcast %cst_27 : f32 to vector<2x128xf32>
    %57 = arith.mulf %56, %55 : vector<2x128xf32>
    %58 = vector.extract_strided_slice %49 {offsets = [0, 128], sizes = [2, 128], strides = [1, 1]} : vector<2x512xf32> to vector<2x128xf32>
    %cst_28 = arith.constant 5.000000e-01 : f32
    %59 = vector.broadcast %cst_28 : f32 to vector<2x128xf32>
    %60 = arith.mulf %59, %58 : vector<2x128xf32>
    %61 = math.tanh %60 : vector<2x128xf32>
    %cst_29 = arith.constant 1.000000e+00 : f32
    %62 = vector.broadcast %cst_29 : f32 to vector<2x128xf32>
    %63 = arith.addf %61, %62 : vector<2x128xf32>
    %cst_30 = arith.constant 5.000000e-01 : f32
    %64 = vector.broadcast %cst_30 : f32 to vector<2x128xf32>
    %65 = arith.mulf %64, %63 : vector<2x128xf32>
    %66 = vector.extract_strided_slice %49 {offsets = [0, 256], sizes = [2, 128], strides = [1, 1]} : vector<2x512xf32> to vector<2x128xf32>
    %67 = math.tanh %66 : vector<2x128xf32>
    %68 = vector.extract_strided_slice %49 {offsets = [0, 384], sizes = [2, 128], strides = [1, 1]} : vector<2x512xf32> to vector<2x128xf32>
    %cst_31 = arith.constant 5.000000e-01 : f32
    %69 = vector.broadcast %cst_31 : f32 to vector<2x128xf32>
    %70 = arith.mulf %69, %68 : vector<2x128xf32>
    %71 = math.tanh %70 : vector<2x128xf32>
    %cst_32 = arith.constant 1.000000e+00 : f32
    %72 = vector.broadcast %cst_32 : f32 to vector<2x128xf32>
    %73 = arith.addf %71, %72 : vector<2x128xf32>
    %cst_33 = arith.constant 5.000000e-01 : f32
    %74 = vector.broadcast %cst_33 : f32 to vector<2x128xf32>
    %75 = arith.mulf %74, %73 : vector<2x128xf32>
    %76 = arith.mulf %65, %43 : vector<2x128xf32>
    %77 = arith.mulf %57, %67 : vector<2x128xf32>
    %78 = arith.addf %76, %77 : vector<2x128xf32>
    %79 = math.tanh %78 : vector<2x128xf32>
    %80 = arith.mulf %75, %79 : vector<2x128xf32>
    %c2 = arith.constant 2 : index
    %c0_34 = arith.constant 0 : index
    %81 = vector.load %arg15[%c2, %c0_34] : memref<8x128xf32, #tpu.memory_space<vmem>>, vector<2x128xf32>
    tpu.vector_store %arg15[%c2, %c0_34], %80 {strides = array<i32>} : memref<8x128xf32, #tpu.memory_space<vmem>>, vector<2x128xf32>,
    %82 = vector.extract_strided_slice %8 {offsets = [4, 0], sizes = [2, 512], strides = [1, 1]} : vector<8x512xf32> to vector<2x512xf32>
    %cst_35 = arith.constant dense<0.000000e+00> : vector<2x512xf32>
    %83 = tpu.matmul %80, %9, %cst_35 {dimension_numbers = #tpu.dot_dimension_numbers<[1], [0], [0], [1], [0, 0, 1, 1], [], []>} : vector<2x128xf32>, vector<128x512xf32>, vector<2x512xf32> -> vector<2x512xf32>
    %84 = arith.addf %82, %83 : vector<2x512xf32>
    %85 = vector.extract_strided_slice %84 {offsets = [0, 0], sizes = [2, 128], strides = [1, 1]} : vector<2x512xf32> to vector<2x128xf32>
    %cst_36 = arith.constant 5.000000e-01 : f32
    %86 = vector.broadcast %cst_36 : f32 to vector<2x128xf32>
    %87 = arith.mulf %86, %85 : vector<2x128xf32>
    %88 = math.tanh %87 : vector<2x128xf32>
    %cst_37 = arith.constant 1.000000e+00 : f32
    %89 = vector.broadcast %cst_37 : f32 to vector<2x128xf32>
    %90 = arith.addf %88, %89 : vector<2x128xf32>
    %cst_38 = arith.constant 5.000000e-01 : f32
    %91 = vector.broadcast %cst_38 : f32 to vector<2x128xf32>
    %92 = arith.mulf %91, %90 : vector<2x128xf32>
    %93 = vector.extract_strided_slice %84 {offsets = [0, 128], sizes = [2, 128], strides = [1, 1]} : vector<2x512xf32> to vector<2x128xf32>
    %cst_39 = arith.constant 5.000000e-01 : f32
    %94 = vector.broadcast %cst_39 : f32 to vector<2x128xf32>
    %95 = arith.mulf %94, %93 : vector<2x128xf32>
    %96 = math.tanh %95 : vector<2x128xf32>
    %cst_40 = arith.constant 1.000000e+00 : f32
    %97 = vector.broadcast %cst_40 : f32 to vector<2x128xf32>
    %98 = arith.addf %96, %97 : vector<2x128xf32>
    %cst_41 = arith.constant 5.000000e-01 : f32
    %99 = vector.broadcast %cst_41 : f32 to vector<2x128xf32>
    %100 = arith.mulf %99, %98 : vector<2x128xf32>
    %101 = vector.extract_strided_slice %84 {offsets = [0, 256], sizes = [2, 128], strides = [1, 1]} : vector<2x512xf32> to vector<2x128xf32>
    %102 = math.tanh %101 : vector<2x128xf32>
    %103 = vector.extract_strided_slice %84 {offsets = [0, 384], sizes = [2, 128], strides = [1, 1]} : vector<2x512xf32> to vector<2x128xf32>
    %cst_42 = arith.constant 5.000000e-01 : f32
    %104 = vector.broadcast %cst_42 : f32 to vector<2x128xf32>
    %105 = arith.mulf %104, %103 : vector<2x128xf32>
    %106 = math.tanh %105 : vector<2x128xf32>
    %cst_43 = arith.constant 1.000000e+00 : f32
    %107 = vector.broadcast %cst_43 : f32 to vector<2x128xf32>
    %108 = arith.addf %106, %107 : vector<2x128xf32>
    %cst_44 = arith.constant 5.000000e-01 : f32
    %109 = vector.broadcast %cst_44 : f32 to vector<2x128xf32>
    %110 = arith.mulf %109, %108 : vector<2x128xf32>
    %111 = arith.mulf %100, %78 : vector<2x128xf32>
    %112 = arith.mulf %92, %102 : vector<2x128xf32>
    %113 = arith.addf %111, %112 : vector<2x128xf32>
    %114 = math.tanh %113 : vector<2x128xf32>
    %115 = arith.mulf %110, %114 : vector<2x128xf32>
    %c4 = arith.constant 4 : index
    %c0_45 = arith.constant 0 : index
    %116 = vector.load %arg15[%c4, %c0_45] : memref<8x128xf32, #tpu.memory_space<vmem>>, vector<2x128xf32>
    tpu.vector_store %arg15[%c4, %c0_45], %115 {strides = array<i32>} : memref<8x128xf32, #tpu.memory_space<vmem>>, vector<2x128xf32>,
    %117 = vector.extract_strided_slice %8 {offsets = [6, 0], sizes = [2, 512], strides = [1, 1]} : vector<8x512xf32> to vector<2x512xf32>
    %cst_46 = arith.constant dense<0.000000e+00> : vector<2x512xf32>
    %118 = tpu.matmul %115, %9, %cst_46 {dimension_numbers = #tpu.dot_dimension_numbers<[1], [0], [0], [1], [0, 0, 1, 1], [], []>} : vector<2x128xf32>, vector<128x512xf32>, vector<2x512xf32> -> vector<2x512xf32>
    %119 = arith.addf %117, %118 : vector<2x512xf32>
    %120 = vector.extract_strided_slice %119 {offsets = [0, 0], sizes = [2, 128], strides = [1, 1]} : vector<2x512xf32> to vector<2x128xf32>
    %cst_47 = arith.constant 5.000000e-01 : f32
    %121 = vector.broadcast %cst_47 : f32 to vector<2x128xf32>
    %122 = arith.mulf %121, %120 : vector<2x128xf32>
    %123 = math.tanh %122 : vector<2x128xf32>
    %cst_48 = arith.constant 1.000000e+00 : f32
    %124 = vector.broadcast %cst_48 : f32 to vector<2x128xf32>
    %125 = arith.addf %123, %124 : vector<2x128xf32>
    %cst_49 = arith.constant 5.000000e-01 : f32
    %126 = vector.broadcast %cst_49 : f32 to vector<2x128xf32>
    %127 = arith.mulf %126, %125 : vector<2x128xf32>
    %128 = vector.extract_strided_slice %119 {offsets = [0, 128], sizes = [2, 128], strides = [1, 1]} : vector<2x512xf32> to vector<2x128xf32>
    %cst_50 = arith.constant 5.000000e-01 : f32
    %129 = vector.broadcast %cst_50 : f32 to vector<2x128xf32>
    %130 = arith.mulf %129, %128 : vector<2x128xf32>
    %131 = math.tanh %130 : vector<2x128xf32>
    %cst_51 = arith.constant 1.000000e+00 : f32
    %132 = vector.broadcast %cst_51 : f32 to vector<2x128xf32>
    %133 = arith.addf %131, %132 : vector<2x128xf32>
    %cst_52 = arith.constant 5.000000e-01 : f32
    %134 = vector.broadcast %cst_52 : f32 to vector<2x128xf32>
    %135 = arith.mulf %134, %133 : vector<2x128xf32>
    %136 = vector.extract_strided_slice %119 {offsets = [0, 256], sizes = [2, 128], strides = [1, 1]} : vector<2x512xf32> to vector<2x128xf32>
    %137 = math.tanh %136 : vector<2x128xf32>
    %138 = vector.extract_strided_slice %119 {offsets = [0, 384], sizes = [2, 128], strides = [1, 1]} : vector<2x512xf32> to vector<2x128xf32>
    %cst_53 = arith.constant 5.000000e-01 : f32
    %139 = vector.broadcast %cst_53 : f32 to vector<2x128xf32>
    %140 = arith.mulf %139, %138 : vector<2x128xf32>
    %141 = math.tanh %140 : vector<2x128xf32>
    %cst_54 = arith.constant 1.000000e+00 : f32
    %142 = vector.broadcast %cst_54 : f32 to vector<2x128xf32>
    %143 = arith.addf %141, %142 : vector<2x128xf32>
    %cst_55 = arith.constant 5.000000e-01 : f32
    %144 = vector.broadcast %cst_55 : f32 to vector<2x128xf32>
    %145 = arith.mulf %144, %143 : vector<2x128xf32>
    %146 = arith.mulf %135, %113 : vector<2x128xf32>
    %147 = arith.mulf %127, %137 : vector<2x128xf32>
    %148 = arith.addf %146, %147 : vector<2x128xf32>
    %149 = math.tanh %148 : vector<2x128xf32>
    %150 = arith.mulf %145, %149 : vector<2x128xf32>
    %c6 = arith.constant 6 : index
    %c0_56 = arith.constant 0 : index
    %151 = vector.load %arg15[%c6, %c0_56] : memref<8x128xf32, #tpu.memory_space<vmem>>, vector<2x128xf32>
    tpu.vector_store %arg15[%c6, %c0_56], %150 {strides = array<i32>} : memref<8x128xf32, #tpu.memory_space<vmem>>, vector<2x128xf32>,
    %c0_57 = arith.constant 0 : index
    %c0_58 = arith.constant 0 : index
    %152 = vector.load %arg11[%c0_57, %c0_58] : memref<2x128xf32, #tpu.memory_space<vmem>>, vector<2x128xf32>
    tpu.vector_store %arg11[%c0_57, %c0_58], %150 {strides = array<i32>} : memref<2x128xf32, #tpu.memory_space<vmem>>, vector<2x128xf32>,
    %c0_59 = arith.constant 0 : index
    %c0_60 = arith.constant 0 : index
    %153 = vector.load %arg12[%c0_59, %c0_60] : memref<2x128xf32, #tpu.memory_space<vmem>>, vector<2x128xf32>
    tpu.vector_store %arg12[%c0_59, %c0_60], %148 {strides = array<i32>} : memref<2x128xf32, #tpu.memory_space<vmem>>, vector<2x128xf32>,
    %c0_61 = arith.constant 0 : index
    %c0_62 = arith.constant 0 : index
    %154 = vector.load %arg15[%c0_61, %c0_62] : memref<8x128xf32, #tpu.memory_space<vmem>>, vector<8x128xf32>
    %c0_63 = arith.constant 0 : index
    %c0_64 = arith.constant 0 : index
    %155 = vector.load %arg5[%c0_63, %c0_64] : memref<128x512xf32, #tpu.memory_space<vmem>>, vector<128x512xf32>
    %cst_65 = arith.constant dense<0.000000e+00> : vector<8x512xf32>
    %156 = tpu.matmul %154, %155, %cst_65 {dimension_numbers = #tpu.dot_dimension_numbers<[1], [0], [0], [1], [0, 0, 1, 1], [], []>} : vector<8x128xf32>, vector<128x512xf32>, vector<8x512xf32> -> vector<8x512xf32>
    %c0_66 = arith.constant 0 : index
    %c0_67 = arith.constant 0 : index
    %157 = vector.load %arg7[%c0_66, %c0_67] : memref<1x512xf32, #tpu.memory_space<vmem>>, vector<1x512xf32>
    %158 = vector.broadcast %157 : vector<1x512xf32> to vector<8x512xf32>
    %159 = arith.addf %156, %158 : vector<8x512xf32>
    %c0_68 = arith.constant 0 : index
    %c0_69 = arith.constant 0 : index
    %160 = vector.load %arg6[%c0_68, %c0_69] : memref<128x512xf32, #tpu.memory_space<vmem>>, vector<128x512xf32>
    %c0_70 = arith.constant 0 : index
    %c0_71 = arith.constant 0 : index
    %161 = vector.load %arg13[%c0_70, %c0_71] : memref<2x128xf32, #tpu.memory_space<vmem>>, vector<2x128xf32>
    %c0_72 = arith.constant 0 : index
    %c0_73 = arith.constant 0 : index
    %162 = vector.load %arg14[%c0_72, %c0_73] : memref<2x128xf32, #tpu.memory_space<vmem>>, vector<2x128xf32>
    %163 = vector.extract_strided_slice %159 {offsets = [0, 0], sizes = [2, 512], strides = [1, 1]} : vector<8x512xf32> to vector<2x512xf32>
    %cst_74 = arith.constant dense<0.000000e+00> : vector<2x512xf32>
    %164 = tpu.matmul %161, %160, %cst_74 {dimension_numbers = #tpu.dot_dimension_numbers<[1], [0], [0], [1], [0, 0, 1, 1], [], []>} : vector<2x128xf32>, vector<128x512xf32>, vector<2x512xf32> -> vector<2x512xf32>
    %165 = arith.addf %163, %164 : vector<2x512xf32>
    %166 = vector.extract_strided_slice %165 {offsets = [0, 0], sizes = [2, 128], strides = [1, 1]} : vector<2x512xf32> to vector<2x128xf32>
    %cst_75 = arith.constant 5.000000e-01 : f32
    %167 = vector.broadcast %cst_75 : f32 to vector<2x128xf32>
    %168 = arith.mulf %167, %166 : vector<2x128xf32>
    %169 = math.tanh %168 : vector<2x128xf32>
    %cst_76 = arith.constant 1.000000e+00 : f32
    %170 = vector.broadcast %cst_76 : f32 to vector<2x128xf32>
    %171 = arith.addf %169, %170 : vector<2x128xf32>
    %cst_77 = arith.constant 5.000000e-01 : f32
    %172 = vector.broadcast %cst_77 : f32 to vector<2x128xf32>
    %173 = arith.mulf %172, %171 : vector<2x128xf32>
    %174 = vector.extract_strided_slice %165 {offsets = [0, 128], sizes = [2, 128], strides = [1, 1]} : vector<2x512xf32> to vector<2x128xf32>
    %cst_78 = arith.constant 5.000000e-01 : f32
    %175 = vector.broadcast %cst_78 : f32 to vector<2x128xf32>
    %176 = arith.mulf %175, %174 : vector<2x128xf32>
    %177 = math.tanh %176 : vector<2x128xf32>
    %cst_79 = arith.constant 1.000000e+00 : f32
    %178 = vector.broadcast %cst_79 : f32 to vector<2x128xf32>
    %179 = arith.addf %177, %178 : vector<2x128xf32>
    %cst_80 = arith.constant 5.000000e-01 : f32
    %180 = vector.broadcast %cst_80 : f32 to vector<2x128xf32>
    %181 = arith.mulf %180, %179 : vector<2x128xf32>
    %182 = vector.extract_strided_slice %165 {offsets = [0, 256], sizes = [2, 128], strides = [1, 1]} : vector<2x512xf32> to vector<2x128xf32>
    %183 = math.tanh %182 : vector<2x128xf32>
    %184 = vector.extract_strided_slice %165 {offsets = [0, 384], sizes = [2, 128], strides = [1, 1]} : vector<2x512xf32> to vector<2x128xf32>
    %cst_81 = arith.constant 5.000000e-01 : f32
    %185 = vector.broadcast %cst_81 : f32 to vector<2x128xf32>
    %186 = arith.mulf %185, %184 : vector<2x128xf32>
    %187 = math.tanh %186 : vector<2x128xf32>
    %cst_82 = arith.constant 1.000000e+00 : f32
    %188 = vector.broadcast %cst_82 : f32 to vector<2x128xf32>
    %189 = arith.addf %187, %188 : vector<2x128xf32>
    %cst_83 = arith.constant 5.000000e-01 : f32
    %190 = vector.broadcast %cst_83 : f32 to vector<2x128xf32>
    %191 = arith.mulf %190, %189 : vector<2x128xf32>
    %192 = arith.mulf %181, %162 : vector<2x128xf32>
    %193 = arith.mulf %173, %183 : vector<2x128xf32>
    %194 = arith.addf %192, %193 : vector<2x128xf32>
    %195 = math.tanh %194 : vector<2x128xf32>
    %196 = arith.mulf %191, %195 : vector<2x128xf32>
    %197 = vector.extract_strided_slice %159 {offsets = [2, 0], sizes = [2, 512], strides = [1, 1]} : vector<8x512xf32> to vector<2x512xf32>
    %cst_84 = arith.constant dense<0.000000e+00> : vector<2x512xf32>
    %198 = tpu.matmul %196, %160, %cst_84 {dimension_numbers = #tpu.dot_dimension_numbers<[1], [0], [0], [1], [0, 0, 1, 1], [], []>} : vector<2x128xf32>, vector<128x512xf32>, vector<2x512xf32> -> vector<2x512xf32>
    %199 = arith.addf %197, %198 : vector<2x512xf32>
    %200 = vector.extract_strided_slice %199 {offsets = [0, 0], sizes = [2, 128], strides = [1, 1]} : vector<2x512xf32> to vector<2x128xf32>
    %cst_85 = arith.constant 5.000000e-01 : f32
    %201 = vector.broadcast %cst_85 : f32 to vector<2x128xf32>
    %202 = arith.mulf %201, %200 : vector<2x128xf32>
    %203 = math.tanh %202 : vector<2x128xf32>
    %cst_86 = arith.constant 1.000000e+00 : f32
    %204 = vector.broadcast %cst_86 : f32 to vector<2x128xf32>
    %205 = arith.addf %203, %204 : vector<2x128xf32>
    %cst_87 = arith.constant 5.000000e-01 : f32
    %206 = vector.broadcast %cst_87 : f32 to vector<2x128xf32>
    %207 = arith.mulf %206, %205 : vector<2x128xf32>
    %208 = vector.extract_strided_slice %199 {offsets = [0, 128], sizes = [2, 128], strides = [1, 1]} : vector<2x512xf32> to vector<2x128xf32>
    %cst_88 = arith.constant 5.000000e-01 : f32
    %209 = vector.broadcast %cst_88 : f32 to vector<2x128xf32>
    %210 = arith.mulf %209, %208 : vector<2x128xf32>
    %211 = math.tanh %210 : vector<2x128xf32>
    %cst_89 = arith.constant 1.000000e+00 : f32
    %212 = vector.broadcast %cst_89 : f32 to vector<2x128xf32>
    %213 = arith.addf %211, %212 : vector<2x128xf32>
    %cst_90 = arith.constant 5.000000e-01 : f32
    %214 = vector.broadcast %cst_90 : f32 to vector<2x128xf32>
    %215 = arith.mulf %214, %213 : vector<2x128xf32>
    %216 = vector.extract_strided_slice %199 {offsets = [0, 256], sizes = [2, 128], strides = [1, 1]} : vector<2x512xf32> to vector<2x128xf32>
    %217 = math.tanh %216 : vector<2x128xf32>
    %218 = vector.extract_strided_slice %199 {offsets = [0, 384], sizes = [2, 128], strides = [1, 1]} : vector<2x512xf32> to vector<2x128xf32>
    %cst_91 = arith.constant 5.000000e-01 : f32
    %219 = vector.broadcast %cst_91 : f32 to vector<2x128xf32>
    %220 = arith.mulf %219, %218 : vector<2x128xf32>
    %221 = math.tanh %220 : vector<2x128xf32>
    %cst_92 = arith.constant 1.000000e+00 : f32
    %222 = vector.broadcast %cst_92 : f32 to vector<2x128xf32>
    %223 = arith.addf %221, %222 : vector<2x128xf32>
    %cst_93 = arith.constant 5.000000e-01 : f32
    %224 = vector.broadcast %cst_93 : f32 to vector<2x128xf32>
    %225 = arith.mulf %224, %223 : vector<2x128xf32>
    %226 = arith.mulf %215, %194 : vector<2x128xf32>
    %227 = arith.mulf %207, %217 : vector<2x128xf32>
    %228 = arith.addf %226, %227 : vector<2x128xf32>
    %229 = math.tanh %228 : vector<2x128xf32>
    %230 = arith.mulf %225, %229 : vector<2x128xf32>
    %231 = vector.extract_strided_slice %159 {offsets = [4, 0], sizes = [2, 512], strides = [1, 1]} : vector<8x512xf32> to vector<2x512xf32>
    %cst_94 = arith.constant dense<0.000000e+00> : vector<2x512xf32>
    %232 = tpu.matmul %230, %160, %cst_94 {dimension_numbers = #tpu.dot_dimension_numbers<[1], [0], [0], [1], [0, 0, 1, 1], [], []>} : vector<2x128xf32>, vector<128x512xf32>, vector<2x512xf32> -> vector<2x512xf32>
    %233 = arith.addf %231, %232 : vector<2x512xf32>
    %234 = vector.extract_strided_slice %233 {offsets = [0, 0], sizes = [2, 128], strides = [1, 1]} : vector<2x512xf32> to vector<2x128xf32>
    %cst_95 = arith.constant 5.000000e-01 : f32
    %235 = vector.broadcast %cst_95 : f32 to vector<2x128xf32>
    %236 = arith.mulf %235, %234 : vector<2x128xf32>
    %237 = math.tanh %236 : vector<2x128xf32>
    %cst_96 = arith.constant 1.000000e+00 : f32
    %238 = vector.broadcast %cst_96 : f32 to vector<2x128xf32>
    %239 = arith.addf %237, %238 : vector<2x128xf32>
    %cst_97 = arith.constant 5.000000e-01 : f32
    %240 = vector.broadcast %cst_97 : f32 to vector<2x128xf32>
    %241 = arith.mulf %240, %239 : vector<2x128xf32>
    %242 = vector.extract_strided_slice %233 {offsets = [0, 128], sizes = [2, 128], strides = [1, 1]} : vector<2x512xf32> to vector<2x128xf32>
    %cst_98 = arith.constant 5.000000e-01 : f32
    %243 = vector.broadcast %cst_98 : f32 to vector<2x128xf32>
    %244 = arith.mulf %243, %242 : vector<2x128xf32>
    %245 = math.tanh %244 : vector<2x128xf32>
    %cst_99 = arith.constant 1.000000e+00 : f32
    %246 = vector.broadcast %cst_99 : f32 to vector<2x128xf32>
    %247 = arith.addf %245, %246 : vector<2x128xf32>
    %cst_100 = arith.constant 5.000000e-01 : f32
    %248 = vector.broadcast %cst_100 : f32 to vector<2x128xf32>
    %249 = arith.mulf %248, %247 : vector<2x128xf32>
    %250 = vector.extract_strided_slice %233 {offsets = [0, 256], sizes = [2, 128], strides = [1, 1]} : vector<2x512xf32> to vector<2x128xf32>
    %251 = math.tanh %250 : vector<2x128xf32>
    %252 = vector.extract_strided_slice %233 {offsets = [0, 384], sizes = [2, 128], strides = [1, 1]} : vector<2x512xf32> to vector<2x128xf32>
    %cst_101 = arith.constant 5.000000e-01 : f32
    %253 = vector.broadcast %cst_101 : f32 to vector<2x128xf32>
    %254 = arith.mulf %253, %252 : vector<2x128xf32>
    %255 = math.tanh %254 : vector<2x128xf32>
    %cst_102 = arith.constant 1.000000e+00 : f32
    %256 = vector.broadcast %cst_102 : f32 to vector<2x128xf32>
    %257 = arith.addf %255, %256 : vector<2x128xf32>
    %cst_103 = arith.constant 5.000000e-01 : f32
    %258 = vector.broadcast %cst_103 : f32 to vector<2x128xf32>
    %259 = arith.mulf %258, %257 : vector<2x128xf32>
    %260 = arith.mulf %249, %228 : vector<2x128xf32>
    %261 = arith.mulf %241, %251 : vector<2x128xf32>
    %262 = arith.addf %260, %261 : vector<2x128xf32>
    %263 = math.tanh %262 : vector<2x128xf32>
    %264 = arith.mulf %259, %263 : vector<2x128xf32>
    %265 = vector.extract_strided_slice %159 {offsets = [6, 0], sizes = [2, 512], strides = [1, 1]} : vector<8x512xf32> to vector<2x512xf32>
    %cst_104 = arith.constant dense<0.000000e+00> : vector<2x512xf32>
    %266 = tpu.matmul %264, %160, %cst_104 {dimension_numbers = #tpu.dot_dimension_numbers<[1], [0], [0], [1], [0, 0, 1, 1], [], []>} : vector<2x128xf32>, vector<128x512xf32>, vector<2x512xf32> -> vector<2x512xf32>
    %267 = arith.addf %265, %266 : vector<2x512xf32>
    %268 = vector.extract_strided_slice %267 {offsets = [0, 0], sizes = [2, 128], strides = [1, 1]} : vector<2x512xf32> to vector<2x128xf32>
    %cst_105 = arith.constant 5.000000e-01 : f32
    %269 = vector.broadcast %cst_105 : f32 to vector<2x128xf32>
    %270 = arith.mulf %269, %268 : vector<2x128xf32>
    %271 = math.tanh %270 : vector<2x128xf32>
    %cst_106 = arith.constant 1.000000e+00 : f32
    %272 = vector.broadcast %cst_106 : f32 to vector<2x128xf32>
    %273 = arith.addf %271, %272 : vector<2x128xf32>
    %cst_107 = arith.constant 5.000000e-01 : f32
    %274 = vector.broadcast %cst_107 : f32 to vector<2x128xf32>
    %275 = arith.mulf %274, %273 : vector<2x128xf32>
    %276 = vector.extract_strided_slice %267 {offsets = [0, 128], sizes = [2, 128], strides = [1, 1]} : vector<2x512xf32> to vector<2x128xf32>
    %cst_108 = arith.constant 5.000000e-01 : f32
    %277 = vector.broadcast %cst_108 : f32 to vector<2x128xf32>
    %278 = arith.mulf %277, %276 : vector<2x128xf32>
    %279 = math.tanh %278 : vector<2x128xf32>
    %cst_109 = arith.constant 1.000000e+00 : f32
    %280 = vector.broadcast %cst_109 : f32 to vector<2x128xf32>
    %281 = arith.addf %279, %280 : vector<2x128xf32>
    %cst_110 = arith.constant 5.000000e-01 : f32
    %282 = vector.broadcast %cst_110 : f32 to vector<2x128xf32>
    %283 = arith.mulf %282, %281 : vector<2x128xf32>
    %284 = vector.extract_strided_slice %267 {offsets = [0, 256], sizes = [2, 128], strides = [1, 1]} : vector<2x512xf32> to vector<2x128xf32>
    %285 = math.tanh %284 : vector<2x128xf32>
    %286 = vector.extract_strided_slice %267 {offsets = [0, 384], sizes = [2, 128], strides = [1, 1]} : vector<2x512xf32> to vector<2x128xf32>
    %cst_111 = arith.constant 5.000000e-01 : f32
    %287 = vector.broadcast %cst_111 : f32 to vector<2x128xf32>
    %288 = arith.mulf %287, %286 : vector<2x128xf32>
    %289 = math.tanh %288 : vector<2x128xf32>
    %cst_112 = arith.constant 1.000000e+00 : f32
    %290 = vector.broadcast %cst_112 : f32 to vector<2x128xf32>
    %291 = arith.addf %289, %290 : vector<2x128xf32>
    %cst_113 = arith.constant 5.000000e-01 : f32
    %292 = vector.broadcast %cst_113 : f32 to vector<2x128xf32>
    %293 = arith.mulf %292, %291 : vector<2x128xf32>
    %294 = arith.mulf %283, %262 : vector<2x128xf32>
    %295 = arith.mulf %275, %285 : vector<2x128xf32>
    %296 = arith.addf %294, %295 : vector<2x128xf32>
    %297 = math.tanh %296 : vector<2x128xf32>
    %298 = arith.mulf %293, %297 : vector<2x128xf32>
    %c0_114 = arith.constant 0 : index
    %c0_115 = arith.constant 0 : index
    %299 = vector.load %arg13[%c0_114, %c0_115] : memref<2x128xf32, #tpu.memory_space<vmem>>, vector<2x128xf32>
    tpu.vector_store %arg13[%c0_114, %c0_115], %298 {strides = array<i32>} : memref<2x128xf32, #tpu.memory_space<vmem>>, vector<2x128xf32>,
    %c0_116 = arith.constant 0 : index
    %c0_117 = arith.constant 0 : index
    %300 = vector.load %arg14[%c0_116, %c0_117] : memref<2x128xf32, #tpu.memory_space<vmem>>, vector<2x128xf32>
    tpu.vector_store %arg14[%c0_116, %c0_117], %296 {strides = array<i32>} : memref<2x128xf32, #tpu.memory_space<vmem>>, vector<2x128xf32>,
    %c1_i32 = arith.constant 1 : i32
    %301 = arith.cmpi eq, %arg0, %c1_i32 : i32
    %302 = arith.extui %301 : i1 to i32
    %c0_i32_118 = arith.constant 0 : i32
    %303 = arith.cmpi ne, %302, %c0_i32_118 : i32
    scf.if %303 {
      %c0_119 = arith.constant 0 : index
      %c0_120 = arith.constant 0 : index
      %304 = vector.load %arg8[%c0_119, %c0_120] : memref<128x128xf32, #tpu.memory_space<vmem>>, vector<128x128xf32>
      %cst_121 = arith.constant dense<0.000000e+00> : vector<2x128xf32>
      %305 = tpu.matmul %298, %304, %cst_121 {dimension_numbers = #tpu.dot_dimension_numbers<[1], [0], [0], [1], [0, 0, 1, 1], [], []>} : vector<2x128xf32>, vector<128x128xf32>, vector<2x128xf32> -> vector<2x128xf32>
      %c0_122 = arith.constant 0 : index
      %c0_123 = arith.constant 0 : index
      %306 = vector.load %arg9[%c0_122, %c0_123] : memref<1x128xf32, #tpu.memory_space<vmem>>, vector<1x128xf32>
      %307 = vector.broadcast %306 : vector<1x128xf32> to vector<2x128xf32>
      %308 = arith.addf %305, %307 : vector<2x128xf32>
      %309 = tpu.iota {dimensions = array<i32: 1>} : vector<2x128xi32>
      %c3_i32 = arith.constant 3 : i32
      %310 = vector.broadcast %c3_i32 : i32 to vector<2x128xi32>
      %311 = arith.cmpi slt, %309, %310 : vector<2x128xi32>
      %cst_124 = arith.constant -1.000000e+30 : f32
      %312 = vector.broadcast %cst_124 : f32 to vector<2x128xf32>
      %313 = arith.select %311, %308, %312 : vector<2x128xi1>, vector<2x128xf32>
      %cst_125 = arith.constant dense<0xFF800000> : vector<2xf32>
      %314 = vector.multi_reduction <maximumf>, %313, %cst_125 [1] : vector<2x128xf32> to vector<2xf32>
      %315 = vector.shape_cast %314 : vector<2xf32> to vector<2x1xf32>
      %316 = vector.broadcast %315 : vector<2x1xf32> to vector<2x128xf32>
      %317 = arith.subf %313, %316 : vector<2x128xf32>
      %318 = math.exp %317 : vector<2x128xf32>
      %cst_126 = arith.constant dense<0.000000e+00> : vector<2xf32>
      %319 = vector.multi_reduction <add>, %318, %cst_126 [1] : vector<2x128xf32> to vector<2xf32>
      %320 = vector.shape_cast %319 : vector<2xf32> to vector<2x1xf32>
      %321 = math.log %320 : vector<2x1xf32>
      %322 = vector.broadcast %321 : vector<2x1xf32> to vector<2x128xf32>
      %323 = arith.subf %317, %322 : vector<2x128xf32>
      %c0_127 = arith.constant 0 : index
      %c0_128 = arith.constant 0 : index
      %324 = vector.load %arg10[%c0_127, %c0_128] : memref<2x128xf32, #tpu.memory_space<vmem>>, vector<2x128xf32>
      tpu.vector_store %arg10[%c0_127, %c0_128], %323 {strides = array<i32>} : memref<2x128xf32, #tpu.memory_space<vmem>>, vector<2x128xf32>,
    } else {
    }
    return
  }
  func.func @transform_0(%arg0: i32) -> (i32, i32) {
    %c0_i32 = arith.constant 0 : i32
    %c0_i32_0 = arith.constant 0 : i32
    return %arg0, %c0_i32 : i32, i32
  }
  func.func @transform_1(%arg0: i32) -> (i32, i32) {
    %c0_i32 = arith.constant 0 : i32
    %c0_i32_0 = arith.constant 0 : i32
    %c0_i32_1 = arith.constant 0 : i32
    return %c0_i32, %c0_i32_0 : i32, i32
  }
  func.func @transform_2(%arg0: i32) -> (i32, i32) {
    %c0_i32 = arith.constant 0 : i32
    %c0_i32_0 = arith.constant 0 : i32
    %c0_i32_1 = arith.constant 0 : i32
    return %c0_i32, %c0_i32_0 : i32, i32
  }
  func.func @transform_3(%arg0: i32) -> (i32, i32) {
    %c0_i32 = arith.constant 0 : i32
    %c0_i32_0 = arith.constant 0 : i32
    %c0_i32_1 = arith.constant 0 : i32
    return %c0_i32, %c0_i32_0 : i32, i32
  }
  func.func @transform_4(%arg0: i32) -> (i32, i32) {
    %c0_i32 = arith.constant 0 : i32
    %c0_i32_0 = arith.constant 0 : i32
    %c0_i32_1 = arith.constant 0 : i32
    return %c0_i32, %c0_i32_0 : i32, i32
  }
  func.func @transform_5(%arg0: i32) -> (i32, i32) {
    %c0_i32 = arith.constant 0 : i32
    %c0_i32_0 = arith.constant 0 : i32
    %c0_i32_1 = arith.constant 0 : i32
    return %c0_i32, %c0_i32_0 : i32, i32
  }
  func.func @transform_6(%arg0: i32) -> (i32, i32) {
    %c0_i32 = arith.constant 0 : i32
    %c0_i32_0 = arith.constant 0 : i32
    %c0_i32_1 = arith.constant 0 : i32
    return %c0_i32, %c0_i32_0 : i32, i32
  }
  func.func @transform_7(%arg0: i32) -> (i32, i32) {
    %c0_i32 = arith.constant 0 : i32
    %c0_i32_0 = arith.constant 0 : i32
    %c0_i32_1 = arith.constant 0 : i32
    return %c0_i32, %c0_i32_0 : i32, i32
  }
  func.func @transform_8(%arg0: i32) -> (i32, i32) {
    %c0_i32 = arith.constant 0 : i32
    %c0_i32_0 = arith.constant 0 : i32
    %c0_i32_1 = arith.constant 0 : i32
    return %c0_i32, %c0_i32_0 : i32, i32
  }
  func.func @transform_9(%arg0: i32) -> (i32, i32) {
    %c0_i32 = arith.constant 0 : i32
    %c0_i32_0 = arith.constant 0 : i32
    %c0_i32_1 = arith.constant 0 : i32
    return %c0_i32, %c0_i32_0 : i32, i32
  }
}

</mosaic_0001>

<llo_original>
// kernel: tpu_custom_call.1
$region0: #{tpu_custom_call.1}
  #allocation0 [shape = 'u32[]', space=smem, size = 0x4, offset = 0x4, fixed_abs, tag = 'smem constant byte address 0x4 - core index']
  #allocation1 [shape = 'u32[72,128]{1,0:T(1,128)}', space=vmem, size = 0x9000, scoped, tag = 'internal scratch']
  #allocation2 [shape = 'f32[2,128]{1,0:T(2,128)}', space=vmem, size = 0x400, scoped, tag = 'scratch operand']
  #allocation3 [shape = 'f32[2,128]{1,0:T(2,128)}', space=vmem, size = 0x400, scoped, tag = 'scratch operand']
  #allocation4 [shape = 'f32[2,128]{1,0:T(2,128)}', space=vmem, size = 0x400, scoped, tag = 'scratch operand']
  #allocation5 [shape = 'f32[2,128]{1,0:T(2,128)}', space=vmem, size = 0x400, scoped, tag = 'scratch operand']
  #allocation6 [shape = 'f32[8,128]{1,0:T(8,128)}', space=vmem, size = 0x1000, scoped, tag = 'scratch operand']
  %s0 = inlined_call_operand.hbm [shape: f32[16,16], index: 0, kind: input, shape index: {}]
  %s1 = inlined_call_operand.hbm [shape: f32[16,512], index: 1, kind: input, shape index: {}]
  %s2 = inlined_call_operand.hbm [shape: f32[128,512], index: 2, kind: input, shape index: {}]
  %s3 = inlined_call_operand.hbm [shape: f32[1,512], index: 3, kind: input, shape index: {}]
  %s4 = inlined_call_operand.hbm [shape: f32[128,512], index: 4, kind: input, shape index: {}]
  %s5 = inlined_call_operand.hbm [shape: f32[128,512], index: 5, kind: input, shape index: {}]
  %s6 = inlined_call_operand.vmem [shape: f32[1,512], index: 6, kind: input, shape index: {}]
  %s7 = inlined_call_operand.hbm [shape: f32[128,128], index: 7, kind: input, shape index: {}]
  %s8 = inlined_call_operand.vmem [shape: f32[1,128], index: 8, kind: input, shape index: {}]
  %s9 = inlined_call_operand.hbm [shape: f32[2,128], index: 9, kind: output, shape index: {}]
  %s10 = sld [smem:[#allocation0]]
  $region105: #{tpu_custom_call.1} parent=0
    _
  %s12 = ssub.s32 1, %s10
  %s13 = scalar_select 0, %s12, %s10
  $region1: #{tpu_custom_call.1} parent=0
    #allocation7 [shape = 'u8[8192]{0}', space=vmem, size = 0x2000, scoped, tag = 'input window, operand 0']
    #allocation8 [shape = 's32[2]{0}', space=sflag, size = 0x8, scoped, tag = 'scoped memory for tpu_custom_call.1']
    #allocation9 [shape = 's32[2]{0}', space=sflag, size = 0x8, scoped, tag = 'scoped memory for tpu_custom_call.1']
    #allocation10 [shape = 'u8[32768]{0}', space=vmem, size = 0x8000, scoped, tag = 'input window, operand 1, single buffered']
    #allocation11 [shape = 's32[1]{0}', space=sflag, size = 0x4, scoped, tag = 'scoped memory for tpu_custom_call.1']
    #allocation12 [shape = 'u8[262144]{0}', space=vmem, size = 0x40000, scoped, tag = 'input window, operand 2, single buffered']
    #allocation13 [shape = 'u8[2048]{0}', space=vmem, size = 0x800, scoped, tag = 'input window, operand 3, single buffered']
    #allocation14 [shape = 's32[1]{0}', space=sflag, size = 0x4, scoped, tag = 'scoped memory for tpu_custom_call.1']
    #allocation15 [shape = 'u8[262144]{0}', space=vmem, size = 0x40000, scoped, tag = 'input window, operand 4, single buffered']
    #allocation16 [shape = 'u8[262144]{0}', space=vmem, size = 0x40000, scoped, tag = 'input window, operand 5, single buffered']
    #allocation17 [shape = 's32[1]{0}', space=sflag, size = 0x4, scoped, tag = 'scoped memory for tpu_custom_call.1']
    #allocation18 [shape = 'u8[65536]{0}', space=vmem, size = 0x10000, scoped, tag = 'input window, operand 7, single buffered']
    #allocation19 [shape = 'u8[1024]{0}', space=vmem, size = 0x400, scoped, tag = 'output window, operand 0, single buffered']
    %14 = vsyncpa [#allocation8], 0
    %s15 = scalar_lea.sflag [#allocation8], 1
    %16 = vsyncpa %s15, 0
    %17 = vsyncpa [#allocation11], 0
    %18 = vsyncpa [#allocation14], 0
    %19 = vsyncpa [#allocation17], 0
    %20 = vsyncpa [#allocation9], 0
    loop: start=0, step=1, limit=4
    $region2: #{tpu_custom_call.1} parent=1 // loop_pre_header
      _
    $region3: #{tpu_custom_call.1} parent=1 // loop_header
      %s22 = sphi 0, %s26
      %p23 = scmp.ge.s32.totalorder %s22, 4
      %s32 = sphi 0, %s34
      %s35 = sphi 0, %s32
      %s36 = sphi 0, %s35
      %s52 = sphi 0, %s36
      %s56 = sphi 0, %s56
      %s58 = sphi 0, %s56
      %s59 = sphi 0, %s58
      %s73 = sphi 0, %s59
      %s77 = sphi 0, %s77
      %s79 = sphi 0, %s77
      %s80 = sphi 0, %s79
      %s94 = sphi 0, %s80
      %s98 = sphi 0, %s98
      %s100 = sphi 0, %s98
      %s101 = sphi 0, %s100
      %s115 = sphi 0, %s101
      %s119 = sphi 0, %s119
      %s121 = sphi 0, %s119
      %s122 = sphi 0, %s121
      %s136 = sphi 0, %s122
      %s140 = sphi 0, %s140
      %s142 = sphi 0, %s140
      %s143 = sphi 0, %s142
      %s157 = sphi 0, %s143
      %s161 = sphi 0, %s161
      %s163 = sphi 0, %s161
      %s164 = sphi 0, %s163
      %s178 = sphi 0, %s164
      %s182 = sphi 0, %s182
      %s184 = sphi 0, %s182
      %s185 = sphi 0, %s184
      %s199 = sphi 0, %s185
      %s203 = sphi 0, %s203
      %s205 = sphi 0, %s203
      %s206 = sphi 0, %s205
      %s220 = sphi 0, %s206
      %s224 = sphi 0, %s224
      %s226 = sphi 0, %s224
      %s227 = sphi 0, %s226
      %s241 = sphi 0, %s227
    $region4: #{tpu_custom_call.1} parent=1 // loop_header_branch
      %25 = sbr.rel (%p23) target = $region8
    $region5: #{tpu_custom_call.1} parent=1 // loop_body
      %s27 = ssub.s32 %s22, 1
      %s28 = ssub.s32 %s22, 2
      %s29 = sadd.s32 %s22, 1
      %s30 = ssub.s32 %s22, %s29
      %p31 = scmp.eq.s32.totalorder %s30, 0
      %s33 = sadd.s32 %s32, 1
      %s34 = scalar_select %p31, %s32, %s33
      %p37 = pneg %p31
      %p38 = scmp.eq.s32.totalorder %s22, 1
      %p39 = por %p37, %p38
      %p40 = scmp.ne.s32.totalorder %s32, %s35
      %p41 = scmp.eq.s32.totalorder %s22, 0
      %p42 = por %p40, %p41
      %p43 = scmp.ne.s32.totalorder %s32, %s35
      %p44 = scmp.eq.s32.totalorder %s27, 1
      %p45 = por %p43, %p44
      %p46 = scmp.ne.s32.totalorder %s35, %s36
      %p47 = scmp.eq.s32.totalorder %s27, 0
      %p48 = por %p46, %p47
      %p49 = scmp.ne.s32.totalorder %s35, %s36
      %p50 = scmp.eq.s32.totalorder %s28, 1
      %p51 = por %p49, %p50
      %p53 = scmp.ne.s32.totalorder %s36, %s52
      %p54 = scmp.eq.s32.totalorder %s28, 0
      %p55 = por %p53, %p54
      %s57 = sadd.s32 %s56, 1
      %p60 = scmp.eq.s32.totalorder %s22, 1
      %p61 = scmp.ne.s32.totalorder %s56, %s58
      %p62 = scmp.eq.s32.totalorder %s22, 0
      %p63 = por %p61, %p62
      %p64 = scmp.ne.s32.totalorder %s56, %s58
      %p65 = scmp.eq.s32.totalorder %s27, 1
      %p66 = por %p64, %p65
      %p67 = scmp.ne.s32.totalorder %s58, %s59
      %p68 = scmp.eq.s32.totalorder %s27, 0
      %p69 = por %p67, %p68
      %p70 = scmp.ne.s32.totalorder %s58, %s59
      %p71 = scmp.eq.s32.totalorder %s28, 1
      %p72 = por %p70, %p71
      %p74 = scmp.ne.s32.totalorder %s59, %s73
      %p75 = scmp.eq.s32.totalorder %s28, 0
      %p76 = por %p74, %p75
      %s78 = sadd.s32 %s77, 1
      %p81 = scmp.eq.s32.totalorder %s22, 1
      %p82 = scmp.ne.s32.totalorder %s77, %s79
      %p83 = scmp.eq.s32.totalorder %s22, 0
      %p84 = por %p82, %p83
      %p85 = scmp.ne.s32.totalorder %s77, %s79
      %p86 = scmp.eq.s32.totalorder %s27, 1
      %p87 = por %p85, %p86
      %p88 = scmp.ne.s32.totalorder %s79, %s80
      %p89 = scmp.eq.s32.totalorder %s27, 0
      %p90 = por %p88, %p89
      %p91 = scmp.ne.s32.totalorder %s79, %s80
      %p92 = scmp.eq.s32.totalorder %s28, 1
      %p93 = por %p91, %p92
      %p95 = scmp.ne.s32.totalorder %s80, %s94
      %p96 = scmp.eq.s32.totalorder %s28, 0
      %p97 = por %p95, %p96
      %s99 = sadd.s32 %s98, 1
      %p102 = scmp.eq.s32.totalorder %s22, 1
      %p103 = scmp.ne.s32.totalorder %s98, %s100
      %p104 = scmp.eq.s32.totalorder %s22, 0
      %p105 = por %p103, %p104
      %p106 = scmp.ne.s32.totalorder %s98, %s100
      %p107 = scmp.eq.s32.totalorder %s27, 1
      %p108 = por %p106, %p107
      %p109 = scmp.ne.s32.totalorder %s100, %s101
      %p110 = scmp.eq.s32.totalorder %s27, 0
      %p111 = por %p109, %p110
      %p112 = scmp.ne.s32.totalorder %s100, %s101
      %p113 = scmp.eq.s32.totalorder %s28, 1
      %p114 = por %p112, %p113
      %p116 = scmp.ne.s32.totalorder %s101, %s115
      %p117 = scmp.eq.s32.totalorder %s28, 0
      %p118 = por %p116, %p117
      %s120 = sadd.s32 %s119, 1
      %p123 = scmp.eq.s32.totalorder %s22, 1
      %p124 = scmp.ne.s32.totalorder %s119, %s121
      %p125 = scmp.eq.s32.totalorder %s22, 0
      %p126 = por %p124, %p125
      %p127 = scmp.ne.s32.totalorder %s119, %s121
      %p128 = scmp.eq.s32.totalorder %s27, 1
      %p129 = por %p127, %p128
      %p130 = scmp.ne.s32.totalorder %s121, %s122
      %p131 = scmp.eq.s32.totalorder %s27, 0
      %p132 = por %p130, %p131
      %p133 = scmp.ne.s32.totalorder %s121, %s122
      %p134 = scmp.eq.s32.totalorder %s28, 1
      %p135 = por %p133, %p134
      %p137 = scmp.ne.s32.totalorder %s122, %s136
      %p138 = scmp.eq.s32.totalorder %s28, 0
      %p139 = por %p137, %p138
      %s141 = sadd.s32 %s140, 1
      %p144 = scmp.eq.s32.totalorder %s22, 1
      %p145 = scmp.ne.s32.totalorder %s140, %s142
      %p146 = scmp.eq.s32.totalorder %s22, 0
      %p147 = por %p145, %p146
      %p148 = scmp.ne.s32.totalorder %s140, %s142
      %p149 = scmp.eq.s32.totalorder %s27, 1
      %p150 = por %p148, %p149
      %p151 = scmp.ne.s32.totalorder %s142, %s143
      %p152 = scmp.eq.s32.totalorder %s27, 0
      %p153 = por %p151, %p152
      %p154 = scmp.ne.s32.totalorder %s142, %s143
      %p155 = scmp.eq.s32.totalorder %s28, 1
      %p156 = por %p154, %p155
      %p158 = scmp.ne.s32.totalorder %s143, %s157
      %p159 = scmp.eq.s32.totalorder %s28, 0
      %p160 = por %p158, %p159
      %s162 = sadd.s32 %s161, 1
      %p165 = scmp.eq.s32.totalorder %s22, 1
      %p166 = scmp.ne.s32.totalorder %s161, %s163
      %p167 = scmp.eq.s32.totalorder %s22, 0
      %p168 = por %p166, %p167
      %p169 = scmp.ne.s32.totalorder %s161, %s163
      %p170 = scmp.eq.s32.totalorder %s27, 1
      %p171 = por %p169, %p170
      %p172 = scmp.ne.s32.totalorder %s163, %s164
      %p173 = scmp.eq.s32.totalorder %s27, 0
      %p174 = por %p172, %p173
      %p175 = scmp.ne.s32.totalorder %s163, %s164
      %p176 = scmp.eq.s32.totalorder %s28, 1
      %p177 = por %p175, %p176
      %p179 = scmp.ne.s32.totalorder %s164, %s178
      %p180 = scmp.eq.s32.totalorder %s28, 0
      %p181 = por %p179, %p180
      %s183 = sadd.s32 %s182, 1
      %p186 = scmp.eq.s32.totalorder %s22, 1
      %p187 = scmp.ne.s32.totalorder %s182, %s184
      %p188 = scmp.eq.s32.totalorder %s22, 0
      %p189 = por %p187, %p188
      %p190 = scmp.ne.s32.totalorder %s182, %s184
      %p191 = scmp.eq.s32.totalorder %s27, 1
      %p192 = por %p190, %p191
      %p193 = scmp.ne.s32.totalorder %s184, %s185
      %p194 = scmp.eq.s32.totalorder %s27, 0
      %p195 = por %p193, %p194
      %p196 = scmp.ne.s32.totalorder %s184, %s185
      %p197 = scmp.eq.s32.totalorder %s28, 1
      %p198 = por %p196, %p197
      %p200 = scmp.ne.s32.totalorder %s185, %s199
      %p201 = scmp.eq.s32.totalorder %s28, 0
      %p202 = por %p200, %p201
      %s204 = sadd.s32 %s203, 1
      %p207 = scmp.eq.s32.totalorder %s22, 1
      %p208 = scmp.ne.s32.totalorder %s203, %s205
      %p209 = scmp.eq.s32.totalorder %s22, 0
      %p210 = por %p208, %p209
      %p211 = scmp.ne.s32.totalorder %s203, %s205
      %p212 = scmp.eq.s32.totalorder %s27, 1
      %p213 = por %p211, %p212
      %p214 = scmp.ne.s32.totalorder %s205, %s206
      %p215 = scmp.eq.s32.totalorder %s27, 0
      %p216 = por %p214, %p215
      %p217 = scmp.ne.s32.totalorder %s205, %s206
      %p218 = scmp.eq.s32.totalorder %s28, 1
      %p219 = por %p217, %p218
      %p221 = scmp.ne.s32.totalorder %s206, %s220
      %p222 = scmp.eq.s32.totalorder %s28, 0
      %p223 = por %p221, %p222
      %s225 = sadd.s32 %s224, 1
      %p228 = scmp.eq.s32.totalorder %s22, 1
      %p229 = scmp.ne.s32.totalorder %s224, %s226
      %p230 = scmp.eq.s32.totalorder %s22, 0
      %p231 = por %p229, %p230
      %p232 = scmp.ne.s32.totalorder %s224, %s226
      %p233 = scmp.eq.s32.totalorder %s27, 1
      %p234 = por %p232, %p233
      %p235 = scmp.ne.s32.totalorder %s226, %s227
      %p236 = scmp.eq.s32.totalorder %s27, 0
      %p237 = por %p235, %p236
      %p238 = scmp.ne.s32.totalorder %s226, %s227
      %p239 = scmp.eq.s32.totalorder %s28, 1
      %p240 = por %p238, %p239
      %p242 = scmp.ne.s32.totalorder %s227, %s241
      %p243 = scmp.eq.s32.totalorder %s28, 0
      %p244 = por %p242, %p243
      %p245 = scmp.le.s32.totalorder 1, %s22
      %p246 = scmp.lt.s32.totalorder %s22, 3
      %p247 = pnand %p245, %p246
      %p248 = pneg %p247
      // Predicated region
      $region9: #{tpu_custom_call.1} parent=5 // pred_check
        _
      $region10: #{tpu_custom_call.1} parent=5 // pred_check_branch
        %250 = sbr.rel (%p247) target = $region12
      $region11: #{tpu_custom_call.1} parent=5 // pred_region
        %s251 = ssub.s32 %s22, 1
        // Predicated region
        $region13: #{tpu_custom_call.1} parent=11 // pred_check
          %p252 = pneg %p69
        $region14: #{tpu_custom_call.1} parent=11 // pred_check_branch
          %254 = sbr.rel (%p252) target = $region16
        $region15: #{tpu_custom_call.1} parent=11 // pred_region
          %256 = vsyncadd [#allocation11], 0
          %s257 = sshll.u32 %s1, 4
          %s258 = int_to_ptr.hbm [resolvable:$true] %s257
          %s259 = sshll.u32 [#allocation10], 4
          %s260 = int_to_ptr.vmem [resolvable:$true] %s259
          %265 = dma.hbm_to_vmem [thread:$0]  %s258, 1024, %s260, [#allocation11], 512, 512, 32
        $region16: #{tpu_custom_call.1} parent=11 // pred_fallthru
          _
        // Predicated region
        $region17: #{tpu_custom_call.1} parent=11 // pred_check
          %p266 = pneg %p90
        $region18: #{tpu_custom_call.1} parent=11 // pred_check_branch
          %268 = sbr.rel (%p266) target = $region20
        $region19: #{tpu_custom_call.1} parent=11 // pred_region
          %270 = vsyncadd [#allocation11], 0
          %s271 = sshll.u32 %s2, 4
          %s272 = int_to_ptr.hbm [resolvable:$true] %s271
          %s273 = sshll.u32 [#allocation12], 4
          %s274 = int_to_ptr.vmem [resolvable:$true] %s273
          %279 = dma.hbm_to_vmem [thread:$0]  %s272, 8192, %s274, [#allocation11], 512, 512, 32
        $region20: #{tpu_custom_call.1} parent=11 // pred_fallthru
          _
        // Predicated region
        $region21: #{tpu_custom_call.1} parent=11 // pred_check
          %p280 = pneg %p111
        $region22: #{tpu_custom_call.1} parent=11 // pred_check_branch
          %282 = sbr.rel (%p280) target = $region24
        $region23: #{tpu_custom_call.1} parent=11 // pred_region
          %284 = vsyncadd [#allocation14], 0
          %s286 = sshll.u32 %s3, 4
          %s287 = int_to_ptr.hbm [resolvable:$true] %s286
          %s288 = sshll.u32 [#allocation13], 4
          %s289 = int_to_ptr.vmem [resolvable:$true] %s288
          %291 = dma.hbm_to_vmem [thread:$0]  %s287, 64, %s289, [#allocation14]
        $region24: #{tpu_custom_call.1} parent=11 // pred_fallthru
          _
        // Predicated region
        $region25: #{tpu_custom_call.1} parent=11 // pred_check
          %p292 = pneg %p132
        $region26: #{tpu_custom_call.1} parent=11 // pred_check_branch
          %294 = sbr.rel (%p292) target = $region28
        $region27: #{tpu_custom_call.1} parent=11 // pred_region
          %296 = vsyncadd [#allocation14], 0
          %s297 = sshll.u32 %s4, 4
          %s298 = int_to_ptr.hbm [resolvable:$true] %s297
          %s299 = sshll.u32 [#allocation15], 4
          %s300 = int_to_ptr.vmem [resolvable:$true] %s299
          %305 = dma.hbm_to_vmem [thread:$0]  %s298, 8192, %s300, [#allocation14], 512, 512, 32
        $region28: #{tpu_custom_call.1} parent=11 // pred_fallthru
          _
        // Predicated region
        $region29: #{tpu_custom_call.1} parent=11 // pred_check
          %p306 = pneg %p153
        $region30: #{tpu_custom_call.1} parent=11 // pred_check_branch
          %308 = sbr.rel (%p306) target = $region32
        $region31: #{tpu_custom_call.1} parent=11 // pred_region
          %310 = vsyncadd [#allocation17], 0
          %s311 = sshll.u32 %s5, 4
          %s312 = int_to_ptr.hbm [resolvable:$true] %s311
          %s313 = sshll.u32 [#allocation16], 4
          %s314 = int_to_ptr.vmem [resolvable:$true] %s313
          %319 = dma.hbm_to_vmem [thread:$0]  %s312, 8192, %s314, [#allocation17], 512, 512, 32
        $region32: #{tpu_custom_call.1} parent=11 // pred_fallthru
          _
        // Predicated region
        $region33: #{tpu_custom_call.1} parent=11 // pred_check
          %p320 = pneg %p174
        $region34: #{tpu_custom_call.1} parent=11 // pred_check_branch
          %322 = sbr.rel (%p320) target = $region36
        $region35: #{tpu_custom_call.1} parent=11 // pred_region
          _
        $region36: #{tpu_custom_call.1} parent=11 // pred_fallthru
          _
        // Predicated region
        $region37: #{tpu_custom_call.1} parent=11 // pred_check
          %p323 = pneg %p195
        $region38: #{tpu_custom_call.1} parent=11 // pred_check_branch
          %325 = sbr.rel (%p323) target = $region40
        $region39: #{tpu_custom_call.1} parent=11 // pred_region
          %327 = vsyncadd [#allocation17], 0
          %s328 = sshll.u32 %s7, 4
          %s329 = int_to_ptr.hbm [resolvable:$true] %s328
          %s330 = sshll.u32 [#allocation18], 4
          %s331 = int_to_ptr.vmem [resolvable:$true] %s330
          %336 = dma.hbm_to_vmem [thread:$0]  %s329, 2048, %s331, [#allocation17], 128, 128, 8
        $region40: #{tpu_custom_call.1} parent=11 // pred_fallthru
          _
        // Predicated region
        $region41: #{tpu_custom_call.1} parent=11 // pred_check
          %p337 = pneg %p216
        $region42: #{tpu_custom_call.1} parent=11 // pred_check_branch
          %339 = sbr.rel (%p337) target = $region44
        $region43: #{tpu_custom_call.1} parent=11 // pred_region
          _
        $region44: #{tpu_custom_call.1} parent=11 // pred_fallthru
          _
      $region12: #{tpu_custom_call.1} parent=5 // pred_fallthru
        _
      %p340 = scmp.lt.s32.totalorder %s22, 2
      // Predicated region
      $region45: #{tpu_custom_call.1} parent=5 // pred_check
        %p341 = pneg %p340
      $region46: #{tpu_custom_call.1} parent=5 // pred_check_branch
        %343 = sbr.rel (%p341) target = $region48
      $region47: #{tpu_custom_call.1} parent=5 // pred_region
        // Predicated region
        $region49: #{tpu_custom_call.1} parent=47 // pred_check
          %p344 = pneg %p42
        $region50: #{tpu_custom_call.1} parent=47 // pred_check_branch
          %346 = sbr.rel (%p344) target = $region52
        $region51: #{tpu_custom_call.1} parent=47 // pred_region
          %s347 = sand.u32 %s32, 1
          %s348 = scalar_lea.sflag [#allocation8], %s347
          %s349 = sand.u32 %s32, 1
          %s350 = smul.addr %s349, 8
          %s351 = scalar_lea.vmem [#allocation7], %s350
          %353 = vsyncadd %s348, 0
          %s354 = smul.addr %s22, 8
          %s355 = scalar_lea.hbm %s0, %s354
          %s357 = sshll.u32 %s355, 4
          %s358 = int_to_ptr.hbm [resolvable:$true] %s357
          %s359 = sshll.u32 %s351, 4
          %s360 = int_to_ptr.vmem [resolvable:$true] %s359
          %362 = dma.hbm_to_vmem [thread:$0]  %s358, 128, %s360, %s348
        $region52: #{tpu_custom_call.1} parent=47 // pred_fallthru
          _
      $region48: #{tpu_custom_call.1} parent=5 // pred_fallthru
        _
      %p363 = scmp.le.s32.totalorder 1, %s22
      %p364 = scmp.lt.s32.totalorder %s22, 3
      %p365 = pnand %p363, %p364
      %p366 = pneg %p365
      // Predicated region
      $region53: #{tpu_custom_call.1} parent=5 // pred_check
        _
      $region54: #{tpu_custom_call.1} parent=5 // pred_check_branch
        %368 = sbr.rel (%p365) target = $region56
      $region55: #{tpu_custom_call.1} parent=5 // pred_region
        %s369 = ssub.s32 %s22, 1
        %s370 = sand.u32 %s35, 1
        %s371 = scalar_lea.sflag [#allocation8], %s370
        %s372 = sand.u32 %s35, 1
        %s373 = smul.addr %s372, 8
        %s374 = scalar_lea.vmem [#allocation7], %s373
        // Predicated region
        $region57: #{tpu_custom_call.1} parent=55 // pred_check
          %p375 = pneg %p48
        $region58: #{tpu_custom_call.1} parent=55 // pred_check_branch
          %377 = sbr.rel (%p375) target = $region60
        $region59: #{tpu_custom_call.1} parent=55 // pred_region
          %379 = dma.done %s371, 128
        $region60: #{tpu_custom_call.1} parent=55 // pred_fallthru
          _
        // Predicated region
        $region61: #{tpu_custom_call.1} parent=55 // pred_check
          %p380 = pneg %p69
        $region62: #{tpu_custom_call.1} parent=55 // pred_check_branch
          %382 = sbr.rel (%p380) target = $region64
        $region63: #{tpu_custom_call.1} parent=55 // pred_region
          %384 = dma.done [#allocation11], 1024
        $region64: #{tpu_custom_call.1} parent=55 // pred_fallthru
          _
        // Predicated region
        $region65: #{tpu_custom_call.1} parent=55 // pred_check
          %p385 = pneg %p90
        $region66: #{tpu_custom_call.1} parent=55 // pred_check_branch
          %387 = sbr.rel (%p385) target = $region68
        $region67: #{tpu_custom_call.1} parent=55 // pred_region
          %389 = dma.done [#allocation11], 8192
        $region68: #{tpu_custom_call.1} parent=55 // pred_fallthru
          _
        // Predicated region
        $region69: #{tpu_custom_call.1} parent=55 // pred_check
          %p390 = pneg %p111
        $region70: #{tpu_custom_call.1} parent=55 // pred_check_branch
          %392 = sbr.rel (%p390) target = $region72
        $region71: #{tpu_custom_call.1} parent=55 // pred_region
          %394 = dma.done [#allocation14], 64
        $region72: #{tpu_custom_call.1} parent=55 // pred_fallthru
          _
        // Predicated region
        $region73: #{tpu_custom_call.1} parent=55 // pred_check
          %p395 = pneg %p132
        $region74: #{tpu_custom_call.1} parent=55 // pred_check_branch
          %397 = sbr.rel (%p395) target = $region76
        $region75: #{tpu_custom_call.1} parent=55 // pred_region
          %399 = dma.done [#allocation14], 8192
        $region76: #{tpu_custom_call.1} parent=55 // pred_fallthru
          _
        // Predicated region
        $region77: #{tpu_custom_call.1} parent=55 // pred_check
          %p400 = pneg %p153
        $region78: #{tpu_custom_call.1} parent=55 // pred_check_branch
          %402 = sbr.rel (%p400) target = $region80
        $region79: #{tpu_custom_call.1} parent=55 // pred_region
          %404 = dma.done [#allocation17], 8192
        $region80: #{tpu_custom_call.1} parent=55 // pred_fallthru
          _
        // Predicated region
        $region81: #{tpu_custom_call.1} parent=55 // pred_check
          %p405 = pneg %p195
        $region82: #{tpu_custom_call.1} parent=55 // pred_check_branch
          %407 = sbr.rel (%p405) target = $region84
        $region83: #{tpu_custom_call.1} parent=55 // pred_region
          %409 = dma.done [#allocation17], 2048
        $region84: #{tpu_custom_call.1} parent=55 // pred_fallthru
          _
        %s410 = sand.u32 %s35, 1
        %s411 = scalar_lea.sflag [#allocation8], %s410
        %s412 = sand.u32 %s35, 1
        %s413 = smul.addr %s412, 8
        %s414 = scalar_lea.vmem [#allocation7], %s413
        %p415 = pneg %p48
        %p416 = pneg %p45
        %p417 = pneg %p69
        %p418 = pneg %p66
        %p419 = pneg %p90
        %p420 = pneg %p87
        %p421 = pneg %p111
        %p422 = pneg %p108
        %p423 = pneg %p132
        %p424 = pneg %p129
        %p425 = pneg %p153
        %p426 = pneg %p150
        %p427 = pneg %p174
        %p428 = pneg %p171
        %p429 = pneg %p195
        %p430 = pneg %p192
        %p431 = pneg %p216
        %p432 = pneg %p213
        %p433 = pneg %p237
        %p434 = pneg %p234
        %p435 = scmp.eq.s32.totalorder %s27, 0
        // Predicated region
        $region85: #{tpu_custom_call.1} parent=55 // pred_check
          %p436 = pneg %p435
        $region86: #{tpu_custom_call.1} parent=55 // pred_check_branch
          %438 = sbr.rel (%p436) target = $region88
        $region87: #{tpu_custom_call.1} parent=55 // pred_region
          %439 = vst [vmem:[#allocation2] sm:$0x3] 0.0
          %440 = vst [vmem:[#allocation3] sm:$0x3] 0.0
          %441 = vst [vmem:[#allocation4] sm:$0x3] 0.0
          %442 = vst [vmem:[#allocation5] sm:$0x3] 0.0
        $region88: #{tpu_custom_call.1} parent=55 // pred_fallthru
          _
        %v443 = vld [vmem:[%s374] sm:$0xff]
        %v444 = vld [vmem:[#allocation10] sm:$0xff]
        %v445 = vld [vmem:[#allocation10 + $0x8] sm:$0xff]
        %v446 = vld [vmem:[#allocation10 + $0x10] sm:$0xff]
        %v447 = vld [vmem:[#allocation10 + $0x18] sm:$0xff]
        %v448 = vld [vmem:[#allocation10 + $0x20] sm:$0xff]
        %v449 = vld [vmem:[#allocation10 + $0x28] sm:$0xff]
        %v450 = vld [vmem:[#allocation10 + $0x30] sm:$0xff]
        %v451 = vld [vmem:[#allocation10 + $0x38] sm:$0xff]
        %v452 = vld [vmem:[#allocation13] sm:$0xf]
        %v454 = vperm.slane %v452, 0
        %v455 = vperm.slane %v452, 1
        %v456 = vperm.slane %v452, 2
        %v457 = vperm.slane %v452, 3
        %vm462 = vcmask 130048
        %v464 = vsel %vm462, %v443, 0
        %466 = vmatpush.msra.mxu0 0.0
        %467 = vmatpush.msra.mxu0 0.0
        %468 = vmatpush.msra.mxu0 0.0
        %469 = vmatpush.msra.mxu0 0.0
        %470 = vmatpush.msra.mxu0 0.0
        %471 = vmatpush.msra.mxu0 0.0
        %472 = vmatpush.msra.mxu0 0.0
        %473 = vmatpush.msra.mxu0 0.0
        %474 = vmatpush.msra.mxu0 0.0
        %475 = vmatpush.msra.mxu0 0.0
        %476 = vmatpush.msra.mxu0 0.0
        %477 = vmatpush.msra.mxu0 0.0
        %478 = vmatpush.msra.mxu0 0.0
        %479 = vmatpush.msra.mxu0 0.0
        %480 = vmatpush.msra.mxu0 %v448
        %481 = vmatpush.msra.mxu0 %v444
        %482 = vmatmul.f32.gmra.mxu0 %v464
        %v483 = vpop.f32.mrf.mxu0
        %v484 = vadd.f32 %v454, %v483
        %485 = vdwg.mxu0
        %486 = vmatpush.msra.mxu0 0.0
        %487 = vmatpush.msra.mxu0 0.0
        %488 = vmatpush.msra.mxu0 0.0
        %489 = vmatpush.msra.mxu0 0.0
        %490 = vmatpush.msra.mxu0 0.0
        %491 = vmatpush.msra.mxu0 0.0
        %492 = vmatpush.msra.mxu0 0.0
        %493 = vmatpush.msra.mxu0 0.0
        %494 = vmatpush.msra.mxu0 0.0
        %495 = vmatpush.msra.mxu0 0.0
        %496 = vmatpush.msra.mxu0 0.0
        %497 = vmatpush.msra.mxu0 0.0
        %498 = vmatpush.msra.mxu0 0.0
        %499 = vmatpush.msra.mxu0 0.0
        %500 = vmatpush.msra.mxu0 %v449
        %501 = vmatpush.msra.mxu0 %v445
        %502 = vmatmul.f32.gmra.mxu0 %v464
        %v503 = vpop.f32.mrf.mxu0
        %v504 = vadd.f32 %v455, %v503
        %505 = vdwg.mxu0
        %506 = vmatpush.msra.mxu0 0.0
        %507 = vmatpush.msra.mxu0 0.0
        %508 = vmatpush.msra.mxu0 0.0
        %509 = vmatpush.msra.mxu0 0.0
        %510 = vmatpush.msra.mxu0 0.0
        %511 = vmatpush.msra.mxu0 0.0
        %512 = vmatpush.msra.mxu0 0.0
        %513 = vmatpush.msra.mxu0 0.0
        %514 = vmatpush.msra.mxu0 0.0
        %515 = vmatpush.msra.mxu0 0.0
        %516 = vmatpush.msra.mxu0 0.0
        %517 = vmatpush.msra.mxu0 0.0
        %518 = vmatpush.msra.mxu0 0.0
        %519 = vmatpush.msra.mxu0 0.0
        %520 = vmatpush.msra.mxu0 %v450
        %521 = vmatpush.msra.mxu0 %v446
        %522 = vmatmul.f32.gmra.mxu0 %v464
        %v523 = vpop.f32.mrf.mxu0
        %v524 = vadd.f32 %v456, %v523
        %525 = vdwg.mxu0
        %526 = vmatpush.msra.mxu0 0.0
        %527 = vmatpush.msra.mxu0 0.0
        %528 = vmatpush.msra.mxu0 0.0
        %529 = vmatpush.msra.mxu0 0.0
        %530 = vmatpush.msra.mxu0 0.0
        %531 = vmatpush.msra.mxu0 0.0
        %532 = vmatpush.msra.mxu0 0.0
        %533 = vmatpush.msra.mxu0 0.0
        %534 = vmatpush.msra.mxu0 0.0
        %535 = vmatpush.msra.mxu0 0.0
        %536 = vmatpush.msra.mxu0 0.0
        %537 = vmatpush.msra.mxu0 0.0
        %538 = vmatpush.msra.mxu0 0.0
        %539 = vmatpush.msra.mxu0 0.0
        %540 = vmatpush.msra.mxu0 %v451
        %541 = vmatpush.msra.mxu0 %v447
        %542 = vmatmul.f32.gmra.mxu0 %v464
        %v543 = vpop.f32.mrf.mxu0
        %v544 = vadd.f32 %v457, %v543
        %545 = vdwg.mxu0
        %v546 = vld [vmem:[#allocation12] sm:$0xff]
        %v547 = vld [vmem:[#allocation12 + $0x8] sm:$0xff]
        %v548 = vld [vmem:[#allocation12 + $0x10] sm:$0xff]
        %v549 = vld [vmem:[#allocation12 + $0x18] sm:$0xff]
        %v550 = vld [vmem:[#allocation12 + $0x20] sm:$0xff]
        %v551 = vld [vmem:[#allocation12 + $0x28] sm:$0xff]
        %v552 = vld [vmem:[#allocation12 + $0x30] sm:$0xff]
        %v553 = vld [vmem:[#allocation12 + $0x38] sm:$0xff]
        %v554 = vld [vmem:[#allocation12 + $0x40] sm:$0xff]
        %v555 = vld [vmem:[#allocation12 + $0x48] sm:$0xff]
        %v556 = vld [vmem:[#allocation12 + $0x50] sm:$0xff]
        %v557 = vld [vmem:[#allocation12 + $0x58] sm:$0xff]
        %v558 = vld [vmem:[#allocation12 + $0x60] sm:$0xff]
        %v559 = vld [vmem:[#allocation12 + $0x68] sm:$0xff]
        %v560 = vld [vmem:[#allocation12 + $0x70] sm:$0xff]
        %v561 = vld [vmem:[#allocation12 + $0x78] sm:$0xff]
        %v562 = vld [vmem:[#allocation12 + $0x80] sm:$0xff]
        %v563 = vld [vmem:[#allocation12 + $0x88] sm:$0xff]
        %v564 = vld [vmem:[#allocation12 + $0x90] sm:$0xff]
        %v565 = vld [vmem:[#allocation12 + $0x98] sm:$0xff]
        %v566 = vld [vmem:[#allocation12 + $0xa0] sm:$0xff]
        %v567 = vld [vmem:[#allocation12 + $0xa8] sm:$0xff]
        %v568 = vld [vmem:[#allocation12 + $0xb0] sm:$0xff]
        %v569 = vld [vmem:[#allocation12 + $0xb8] sm:$0xff]
        %v570 = vld [vmem:[#allocation12 + $0xc0] sm:$0xff]
        %v571 = vld [vmem:[#allocation12 + $0xc8] sm:$0xff]
        %v572 = vld [vmem:[#allocation12 + $0xd0] sm:$0xff]
        %v573 = vld [vmem:[#allocation12 + $0xd8] sm:$0xff]
        %v574 = vld [vmem:[#allocation12 + $0xe0] sm:$0xff]
        %v575 = vld [vmem:[#allocation12 + $0xe8] sm:$0xff]
        %v576 = vld [vmem:[#allocation12 + $0xf0] sm:$0xff]
        %v577 = vld [vmem:[#allocation12 + $0xf8] sm:$0xff]
        %v578 = vld [vmem:[#allocation12 + $0x100] sm:$0xff]
        %v579 = vld [vmem:[#allocation12 + $0x108] sm:$0xff]
        %v580 = vld [vmem:[#allocation12 + $0x110] sm:$0xff]
        %v581 = vld [vmem:[#allocation12 + $0x118] sm:$0xff]
        %v582 = vld [vmem:[#allocation12 + $0x120] sm:$0xff]
        %v583 = vld [vmem:[#allocation12 + $0x128] sm:$0xff]
        %v584 = vld [vmem:[#allocation12 + $0x130] sm:$0xff]
        %v585 = vld [vmem:[#allocation12 + $0x138] sm:$0xff]
        %v586 = vld [vmem:[#allocation12 + $0x140] sm:$0xff]
        %v587 = vld [vmem:[#allocation12 + $0x148] sm:$0xff]
        %v588 = vld [vmem:[#allocation12 + $0x150] sm:$0xff]
        %v589 = vld [vmem:[#allocation12 + $0x158] sm:$0xff]
        %v590 = vld [vmem:[#allocation12 + $0x160] sm:$0xff]
        %v591 = vld [vmem:[#allocation12 + $0x168] sm:$0xff]
        %v592 = vld [vmem:[#allocation12 + $0x170] sm:$0xff]
        %v593 = vld [vmem:[#allocation12 + $0x178] sm:$0xff]
        %v594 = vld [vmem:[#allocation12 + $0x180] sm:$0xff]
        %v595 = vld [vmem:[#allocation12 + $0x188] sm:$0xff]
        %v596 = vld [vmem:[#allocation12 + $0x190] sm:$0xff]
        %v597 = vld [vmem:[#allocation12 + $0x198] sm:$0xff]
        %v598 = vld [vmem:[#allocation12 + $0x1a0] sm:$0xff]
        %v599 = vld [vmem:[#allocation12 + $0x1a8] sm:$0xff]
        %v600 = vld [vmem:[#allocation12 + $0x1b0] sm:$0xff]
        %v601 = vld [vmem:[#allocation12 + $0x1b8] sm:$0xff]
        %v602 = vld [vmem:[#allocation12 + $0x1c0] sm:$0xff]
        %v603 = vld [vmem:[#allocation12 + $0x1c8] sm:$0xff]
        %v604 = vld [vmem:[#allocation12 + $0x1d0] sm:$0xff]
        %v605 = vld [vmem:[#allocation12 + $0x1d8] sm:$0xff]
        %v606 = vld [vmem:[#allocation12 + $0x1e0] sm:$0xff]
        %v607 = vld [vmem:[#allocation12 + $0x1e8] sm:$0xff]
        %v608 = vld [vmem:[#allocation12 + $0x1f0] sm:$0xff]
        %v609 = vld [vmem:[#allocation12 + $0x1f8] sm:$0xff]
        %v610 = vld [vmem:[#allocation2] sm:$0x3]
        %v611 = vld [vmem:[#allocation3] sm:$0x3]
        %612 = vmatpush.msra.mxu0 %v606
        %613 = vmatpush.msra.mxu0 %v602
        %614 = vmatpush.msra.mxu0 %v598
        %615 = vmatpush.msra.mxu0 %v594
        %616 = vmatpush.msra.mxu0 %v590
        %617 = vmatpush.msra.mxu0 %v586
        %618 = vmatpush.msra.mxu0 %v582
        %619 = vmatpush.msra.mxu0 %v578
        %620 = vmatpush.msra.mxu0 %v574
        %621 = vmatpush.msra.mxu0 %v570
        %622 = vmatpush.msra.mxu0 %v566
        %623 = vmatpush.msra.mxu0 %v562
        %624 = vmatpush.msra.mxu0 %v558
        %625 = vmatpush.msra.mxu0 %v554
        %626 = vmatpush.msra.mxu0 %v550
        %627 = vmatpush.msra.mxu0 %v546
        %628 = vmatmul.f32.gmra.mxu0 %v610
        %v629 = vpop.f32.mrf.mxu0
        %v630 = vadd.f32 0.0, %v629
        %631 = vdwg.mxu0
        %632 = vmatpush.msra.mxu0 %v607
        %633 = vmatpush.msra.mxu0 %v603
        %634 = vmatpush.msra.mxu0 %v599
        %635 = vmatpush.msra.mxu0 %v595
        %636 = vmatpush.msra.mxu0 %v591
        %637 = vmatpush.msra.mxu0 %v587
        %638 = vmatpush.msra.mxu0 %v583
        %639 = vmatpush.msra.mxu0 %v579
        %640 = vmatpush.msra.mxu0 %v575
        %641 = vmatpush.msra.mxu0 %v571
        %642 = vmatpush.msra.mxu0 %v567
        %643 = vmatpush.msra.mxu0 %v563
        %644 = vmatpush.msra.mxu0 %v559
        %645 = vmatpush.msra.mxu0 %v555
        %646 = vmatpush.msra.mxu0 %v551
        %647 = vmatpush.msra.mxu0 %v547
        %648 = vmatmul.f32.gmra.mxu0 %v610
        %v649 = vpop.f32.mrf.mxu0
        %v650 = vadd.f32 0.0, %v649
        %651 = vdwg.mxu0
        %652 = vmatpush.msra.mxu0 %v608
        %653 = vmatpush.msra.mxu0 %v604
        %654 = vmatpush.msra.mxu0 %v600
        %655 = vmatpush.msra.mxu0 %v596
        %656 = vmatpush.msra.mxu0 %v592
        %657 = vmatpush.msra.mxu0 %v588
        %658 = vmatpush.msra.mxu0 %v584
        %659 = vmatpush.msra.mxu0 %v580
        %660 = vmatpush.msra.mxu0 %v576
        %661 = vmatpush.msra.mxu0 %v572
        %662 = vmatpush.msra.mxu0 %v568
        %663 = vmatpush.msra.mxu0 %v564
        %664 = vmatpush.msra.mxu0 %v560
        %665 = vmatpush.msra.mxu0 %v556
        %666 = vmatpush.msra.mxu0 %v552
        %667 = vmatpush.msra.mxu0 %v548
        %668 = vmatmul.f32.gmra.mxu0 %v610
        %v669 = vpop.f32.mrf.mxu0
        %v670 = vadd.f32 0.0, %v669
        %671 = vdwg.mxu0
        %672 = vmatpush.msra.mxu0 %v609
        %673 = vmatpush.msra.mxu0 %v605
        %674 = vmatpush.msra.mxu0 %v601
        %675 = vmatpush.msra.mxu0 %v597
        %676 = vmatpush.msra.mxu0 %v593
        %677 = vmatpush.msra.mxu0 %v589
        %678 = vmatpush.msra.mxu0 %v585
        %679 = vmatpush.msra.mxu0 %v581
        %680 = vmatpush.msra.mxu0 %v577
        %681 = vmatpush.msra.mxu0 %v573
        %682 = vmatpush.msra.mxu0 %v569
        %683 = vmatpush.msra.mxu0 %v565
        %684 = vmatpush.msra.mxu0 %v561
        %685 = vmatpush.msra.mxu0 %v557
        %686 = vmatpush.msra.mxu0 %v553
        %687 = vmatpush.msra.mxu0 %v549
        %688 = vmatmul.f32.gmra.mxu0 %v610
        %v689 = vpop.f32.mrf.mxu0
        %v690 = vadd.f32 0.0, %v689
        %691 = vdwg.mxu0
        %v692 = vadd.f32 %v484, %v630
        %v693 = vadd.f32 %v504, %v650
        %v694 = vadd.f32 %v524, %v670
        %v695 = vadd.f32 %v544, %v690
        %v696 = vmul.f32 %v692, 0.5
        %v697 = vtanh.pop %v696
        %v698 = vadd.f32 %v697, 1.0
        %v699 = vmul.f32 %v698, 0.5
        %v700 = vmul.f32 %v693, 0.5
        %v701 = vtanh.pop %v700
        %v702 = vadd.f32 %v701, 1.0
        %v703 = vmul.f32 %v702, 0.5
        %v704 = vtanh.pop %v694
        %v705 = vmul.f32 %v695, 0.5
        %v706 = vtanh.pop %v705
        %v707 = vadd.f32 %v706, 1.0
        %v708 = vmul.f32 %v707, 0.5
        %v709 = vmul.f32 %v703, %v611
        %v710 = vmul.f32 %v699, %v704
        %v711 = vadd.f32 %v709, %v710
        %v712 = vtanh.pop %v711
        %v713 = vmul.f32 %v708, %v712
        %714 = vst [vmem:[#allocation6] sm:$0x3] %v713
        %715 = vmatpush.msra.mxu0 %v606
        %716 = vmatpush.msra.mxu0 %v602
        %717 = vmatpush.msra.mxu0 %v598
        %718 = vmatpush.msra.mxu0 %v594
        %719 = vmatpush.msra.mxu0 %v590
        %720 = vmatpush.msra.mxu0 %v586
        %721 = vmatpush.msra.mxu0 %v582
        %722 = vmatpush.msra.mxu0 %v578
        %723 = vmatpush.msra.mxu0 %v574
        %724 = vmatpush.msra.mxu0 %v570
        %725 = vmatpush.msra.mxu0 %v566
        %726 = vmatpush.msra.mxu0 %v562
        %727 = vmatpush.msra.mxu0 %v558
        %728 = vmatpush.msra.mxu0 %v554
        %729 = vmatpush.msra.mxu0 %v550
        %730 = vmatpush.msra.mxu0 %v546
        %731 = vmatmul.f32.gmra.mxu0 %v713
        %v732 = vpop.f32.mrf.mxu0
        %v733 = vadd.f32 0.0, %v732
        %734 = vdwg.mxu0
        %735 = vmatpush.msra.mxu0 %v607
        %736 = vmatpush.msra.mxu0 %v603
        %737 = vmatpush.msra.mxu0 %v599
        %738 = vmatpush.msra.mxu0 %v595
        %739 = vmatpush.msra.mxu0 %v591
        %740 = vmatpush.msra.mxu0 %v587
        %741 = vmatpush.msra.mxu0 %v583
        %742 = vmatpush.msra.mxu0 %v579
        %743 = vmatpush.msra.mxu0 %v575
        %744 = vmatpush.msra.mxu0 %v571
        %745 = vmatpush.msra.mxu0 %v567
        %746 = vmatpush.msra.mxu0 %v563
        %747 = vmatpush.msra.mxu0 %v559
        %748 = vmatpush.msra.mxu0 %v555
        %749 = vmatpush.msra.mxu0 %v551
        %750 = vmatpush.msra.mxu0 %v547
        %751 = vmatmul.f32.gmra.mxu0 %v713
        %v752 = vpop.f32.mrf.mxu0
        %v753 = vadd.f32 0.0, %v752
        %754 = vdwg.mxu0
        %755 = vmatpush.msra.mxu0 %v608
        %756 = vmatpush.msra.mxu0 %v604
        %757 = vmatpush.msra.mxu0 %v600
        %758 = vmatpush.msra.mxu0 %v596
        %759 = vmatpush.msra.mxu0 %v592
        %760 = vmatpush.msra.mxu0 %v588
        %761 = vmatpush.msra.mxu0 %v584
        %762 = vmatpush.msra.mxu0 %v580
        %763 = vmatpush.msra.mxu0 %v576
        %764 = vmatpush.msra.mxu0 %v572
        %765 = vmatpush.msra.mxu0 %v568
        %766 = vmatpush.msra.mxu0 %v564
        %767 = vmatpush.msra.mxu0 %v560
        %768 = vmatpush.msra.mxu0 %v556
        %769 = vmatpush.msra.mxu0 %v552
        %770 = vmatpush.msra.mxu0 %v548
        %771 = vmatmul.f32.gmra.mxu0 %v713
        %v772 = vpop.f32.mrf.mxu0
        %v773 = vadd.f32 0.0, %v772
        %774 = vdwg.mxu0
        %775 = vmatpush.msra.mxu0 %v609
        %776 = vmatpush.msra.mxu0 %v605
        %777 = vmatpush.msra.mxu0 %v601
        %778 = vmatpush.msra.mxu0 %v597
        %779 = vmatpush.msra.mxu0 %v593
        %780 = vmatpush.msra.mxu0 %v589
        %781 = vmatpush.msra.mxu0 %v585
        %782 = vmatpush.msra.mxu0 %v581
        %783 = vmatpush.msra.mxu0 %v577
        %784 = vmatpush.msra.mxu0 %v573
        %785 = vmatpush.msra.mxu0 %v569
        %786 = vmatpush.msra.mxu0 %v565
        %787 = vmatpush.msra.mxu0 %v561
        %788 = vmatpush.msra.mxu0 %v557
        %789 = vmatpush.msra.mxu0 %v553
        %790 = vmatpush.msra.mxu0 %v549
        %791 = vmatmul.f32.gmra.mxu0 %v713
        %v792 = vpop.f32.mrf.mxu0
        %v793 = vadd.f32 0.0, %v792
        %794 = vdwg.mxu0
        %v799 = vrot.slane %v733, 6
        %v800 = vrot.slane %v753, 6
        %v801 = vrot.slane %v773, 6
        %v802 = vrot.slane %v793, 6
        %v807 = vadd.f32 %v484, %v799
        %v808 = vadd.f32 %v504, %v800
        %v809 = vadd.f32 %v524, %v801
        %v810 = vadd.f32 %v544, %v802
        %v811 = vmul.f32 %v807, 0.5
        %v812 = vtanh.pop %v811
        %v813 = vadd.f32 %v812, 1.0
        %v814 = vmul.f32 %v813, 0.5
        %v815 = vmul.f32 %v808, 0.5
        %v816 = vtanh.pop %v815
        %v817 = vadd.f32 %v816, 1.0
        %v818 = vmul.f32 %v817, 0.5
        %v819 = vtanh.pop %v809
        %v820 = vmul.f32 %v810, 0.5
        %v821 = vtanh.pop %v820
        %v822 = vadd.f32 %v821, 1.0
        %v823 = vmul.f32 %v822, 0.5
        %v825 = vrot.slane %v711, 6
        %v827 = vmul.f32 %v818, %v825
        %v828 = vmul.f32 %v814, %v819
        %v829 = vadd.f32 %v827, %v828
        %v830 = vtanh.pop %v829
        %v831 = vmul.f32 %v823, %v830
        %832 = vst [vmem:[#allocation6] sm:$0xc] %v831
        %v834 = vrot.slane %v831, 2
        %836 = vmatpush.msra.mxu0 %v606
        %837 = vmatpush.msra.mxu0 %v602
        %838 = vmatpush.msra.mxu0 %v598
        %839 = vmatpush.msra.mxu0 %v594
        %840 = vmatpush.msra.mxu0 %v590
        %841 = vmatpush.msra.mxu0 %v586
        %842 = vmatpush.msra.mxu0 %v582
        %843 = vmatpush.msra.mxu0 %v578
        %844 = vmatpush.msra.mxu0 %v574
        %845 = vmatpush.msra.mxu0 %v570
        %846 = vmatpush.msra.mxu0 %v566
        %847 = vmatpush.msra.mxu0 %v562
        %848 = vmatpush.msra.mxu0 %v558
        %849 = vmatpush.msra.mxu0 %v554
        %850 = vmatpush.msra.mxu0 %v550
        %851 = vmatpush.msra.mxu0 %v546
        %852 = vmatmul.f32.gmra.mxu0 %v834
        %v853 = vpop.f32.mrf.mxu0
        %v854 = vadd.f32 0.0, %v853
        %855 = vdwg.mxu0
        %856 = vmatpush.msra.mxu0 %v607
        %857 = vmatpush.msra.mxu0 %v603
        %858 = vmatpush.msra.mxu0 %v599
        %859 = vmatpush.msra.mxu0 %v595
        %860 = vmatpush.msra.mxu0 %v591
        %861 = vmatpush.msra.mxu0 %v587
        %862 = vmatpush.msra.mxu0 %v583
        %863 = vmatpush.msra.mxu0 %v579
        %864 = vmatpush.msra.mxu0 %v575
        %865 = vmatpush.msra.mxu0 %v571
        %866 = vmatpush.msra.mxu0 %v567
        %867 = vmatpush.msra.mxu0 %v563
        %868 = vmatpush.msra.mxu0 %v559
        %869 = vmatpush.msra.mxu0 %v555
        %870 = vmatpush.msra.mxu0 %v551
        %871 = vmatpush.msra.mxu0 %v547
        %872 = vmatmul.f32.gmra.mxu0 %v834
        %v873 = vpop.f32.mrf.mxu0
        %v874 = vadd.f32 0.0, %v873
        %875 = vdwg.mxu0
        %876 = vmatpush.msra.mxu0 %v608
        %877 = vmatpush.msra.mxu0 %v604
        %878 = vmatpush.msra.mxu0 %v600
        %879 = vmatpush.msra.mxu0 %v596
        %880 = vmatpush.msra.mxu0 %v592
        %881 = vmatpush.msra.mxu0 %v588
        %882 = vmatpush.msra.mxu0 %v584
        %883 = vmatpush.msra.mxu0 %v580
        %884 = vmatpush.msra.mxu0 %v576
        %885 = vmatpush.msra.mxu0 %v572
        %886 = vmatpush.msra.mxu0 %v568
        %887 = vmatpush.msra.mxu0 %v564
        %888 = vmatpush.msra.mxu0 %v560
        %889 = vmatpush.msra.mxu0 %v556
        %890 = vmatpush.msra.mxu0 %v552
        %891 = vmatpush.msra.mxu0 %v548
        %892 = vmatmul.f32.gmra.mxu0 %v834
        %v893 = vpop.f32.mrf.mxu0
        %v894 = vadd.f32 0.0, %v893
        %895 = vdwg.mxu0
        %896 = vmatpush.msra.mxu0 %v609
        %897 = vmatpush.msra.mxu0 %v605
        %898 = vmatpush.msra.mxu0 %v601
        %899 = vmatpush.msra.mxu0 %v597
        %900 = vmatpush.msra.mxu0 %v593
        %901 = vmatpush.msra.mxu0 %v589
        %902 = vmatpush.msra.mxu0 %v585
        %903 = vmatpush.msra.mxu0 %v581
        %904 = vmatpush.msra.mxu0 %v577
        %905 = vmatpush.msra.mxu0 %v573
        %906 = vmatpush.msra.mxu0 %v569
        %907 = vmatpush.msra.mxu0 %v565
        %908 = vmatpush.msra.mxu0 %v561
        %909 = vmatpush.msra.mxu0 %v557
        %910 = vmatpush.msra.mxu0 %v553
        %911 = vmatpush.msra.mxu0 %v549
        %912 = vmatmul.f32.gmra.mxu0 %v834
        %v913 = vpop.f32.mrf.mxu0
        %v914 = vadd.f32 0.0, %v913
        %915 = vdwg.mxu0
        %v920 = vrot.slane %v854, 4
        %v921 = vrot.slane %v874, 4
        %v922 = vrot.slane %v894, 4
        %v923 = vrot.slane %v914, 4
        %v928 = vadd.f32 %v484, %v920
        %v929 = vadd.f32 %v504, %v921
        %v930 = vadd.f32 %v524, %v922
        %v931 = vadd.f32 %v544, %v923
        %v932 = vmul.f32 %v928, 0.5
        %v933 = vtanh.pop %v932
        %v934 = vadd.f32 %v933, 1.0
        %v935 = vmul.f32 %v934, 0.5
        %v936 = vmul.f32 %v929, 0.5
        %v937 = vtanh.pop %v936
        %v938 = vadd.f32 %v937, 1.0
        %v939 = vmul.f32 %v938, 0.5
        %v940 = vtanh.pop %v930
        %v941 = vmul.f32 %v931, 0.5
        %v942 = vtanh.pop %v941
        %v943 = vadd.f32 %v942, 1.0
        %v944 = vmul.f32 %v943, 0.5
        %v946 = vrot.slane %v829, 6
        %v948 = vmul.f32 %v939, %v946
        %v949 = vmul.f32 %v935, %v940
        %v950 = vadd.f32 %v948, %v949
        %v951 = vtanh.pop %v950
        %v952 = vmul.f32 %v944, %v951
        %953 = vst [vmem:[#allocation6] sm:$0x30] %v952
        %v955 = vrot.slane %v952, 4
        %957 = vmatpush.msra.mxu0 %v606
        %958 = vmatpush.msra.mxu0 %v602
        %959 = vmatpush.msra.mxu0 %v598
        %960 = vmatpush.msra.mxu0 %v594
        %961 = vmatpush.msra.mxu0 %v590
        %962 = vmatpush.msra.mxu0 %v586
        %963 = vmatpush.msra.mxu0 %v582
        %964 = vmatpush.msra.mxu0 %v578
        %965 = vmatpush.msra.mxu0 %v574
        %966 = vmatpush.msra.mxu0 %v570
        %967 = vmatpush.msra.mxu0 %v566
        %968 = vmatpush.msra.mxu0 %v562
        %969 = vmatpush.msra.mxu0 %v558
        %970 = vmatpush.msra.mxu0 %v554
        %971 = vmatpush.msra.mxu0 %v550
        %972 = vmatpush.msra.mxu0 %v546
        %973 = vmatmul.f32.gmra.mxu0 %v955
        %v974 = vpop.f32.mrf.mxu0
        %v975 = vadd.f32 0.0, %v974
        %976 = vdwg.mxu0
        %977 = vmatpush.msra.mxu0 %v607
        %978 = vmatpush.msra.mxu0 %v603
        %979 = vmatpush.msra.mxu0 %v599
        %980 = vmatpush.msra.mxu0 %v595
        %981 = vmatpush.msra.mxu0 %v591
        %982 = vmatpush.msra.mxu0 %v587
        %983 = vmatpush.msra.mxu0 %v583
        %984 = vmatpush.msra.mxu0 %v579
        %985 = vmatpush.msra.mxu0 %v575
        %986 = vmatpush.msra.mxu0 %v571
        %987 = vmatpush.msra.mxu0 %v567
        %988 = vmatpush.msra.mxu0 %v563
        %989 = vmatpush.msra.mxu0 %v559
        %990 = vmatpush.msra.mxu0 %v555
        %991 = vmatpush.msra.mxu0 %v551
        %992 = vmatpush.msra.mxu0 %v547
        %993 = vmatmul.f32.gmra.mxu0 %v955
        %v994 = vpop.f32.mrf.mxu0
        %v995 = vadd.f32 0.0, %v994
        %996 = vdwg.mxu0
        %997 = vmatpush.msra.mxu0 %v608
        %998 = vmatpush.msra.mxu0 %v604
        %999 = vmatpush.msra.mxu0 %v600
        %1000 = vmatpush.msra.mxu0 %v596
        %1001 = vmatpush.msra.mxu0 %v592
        %1002 = vmatpush.msra.mxu0 %v588
        %1003 = vmatpush.msra.mxu0 %v584
        %1004 = vmatpush.msra.mxu0 %v580
        %1005 = vmatpush.msra.mxu0 %v576
        %1006 = vmatpush.msra.mxu0 %v572
        %1007 = vmatpush.msra.mxu0 %v568
        %1008 = vmatpush.msra.mxu0 %v564
        %1009 = vmatpush.msra.mxu0 %v560
        %1010 = vmatpush.msra.mxu0 %v556
        %1011 = vmatpush.msra.mxu0 %v552
        %1012 = vmatpush.msra.mxu0 %v548
        %1013 = vmatmul.f32.gmra.mxu0 %v955
        %v1014 = vpop.f32.mrf.mxu0
        %v1015 = vadd.f32 0.0, %v1014
        %1016 = vdwg.mxu0
        %1017 = vmatpush.msra.mxu0 %v609
        %1018 = vmatpush.msra.mxu0 %v605
        %1019 = vmatpush.msra.mxu0 %v601
        %1020 = vmatpush.msra.mxu0 %v597
        %1021 = vmatpush.msra.mxu0 %v593
        %1022 = vmatpush.msra.mxu0 %v589
        %1023 = vmatpush.msra.mxu0 %v585
        %1024 = vmatpush.msra.mxu0 %v581
        %1025 = vmatpush.msra.mxu0 %v577
        %1026 = vmatpush.msra.mxu0 %v573
        %1027 = vmatpush.msra.mxu0 %v569
        %1028 = vmatpush.msra.mxu0 %v565
        %1029 = vmatpush.msra.mxu0 %v561
        %1030 = vmatpush.msra.mxu0 %v557
        %1031 = vmatpush.msra.mxu0 %v553
        %1032 = vmatpush.msra.mxu0 %v549
        %1033 = vmatmul.f32.gmra.mxu0 %v955
        %v1034 = vpop.f32.mrf.mxu0
        %v1035 = vadd.f32 0.0, %v1034
        %1036 = vdwg.mxu0
        %v1041 = vrot.slane %v975, 2
        %v1042 = vrot.slane %v995, 2
        %v1043 = vrot.slane %v1015, 2
        %v1044 = vrot.slane %v1035, 2
        %v1049 = vadd.f32 %v484, %v1041
        %v1050 = vadd.f32 %v504, %v1042
        %v1051 = vadd.f32 %v524, %v1043
        %v1052 = vadd.f32 %v544, %v1044
        %v1053 = vmul.f32 %v1049, 0.5
        %v1054 = vtanh.pop %v1053
        %v1055 = vadd.f32 %v1054, 1.0
        %v1056 = vmul.f32 %v1055, 0.5
        %v1057 = vmul.f32 %v1050, 0.5
        %v1058 = vtanh.pop %v1057
        %v1059 = vadd.f32 %v1058, 1.0
        %v1060 = vmul.f32 %v1059, 0.5
        %v1061 = vtanh.pop %v1051
        %v1062 = vmul.f32 %v1052, 0.5
        %v1063 = vtanh.pop %v1062
        %v1064 = vadd.f32 %v1063, 1.0
        %v1065 = vmul.f32 %v1064, 0.5
        %v1067 = vrot.slane %v950, 6
        %v1069 = vmul.f32 %v1060, %v1067
        %v1070 = vmul.f32 %v1056, %v1061
        %v1071 = vadd.f32 %v1069, %v1070
        %v1072 = vtanh.pop %v1071
        %v1073 = vmul.f32 %v1065, %v1072
        %1074 = vst [vmem:[#allocation6] sm:$0xc0] %v1073
        %1075 = vst [vmem:[#allocation2 - $0x6] sm:$0xc0] %v1073
        %1076 = vst [vmem:[#allocation3 - $0x6] sm:$0xc0] %v1071
        %v1077 = vld [vmem:[#allocation6] sm:$0xff]
        %v1078 = vld [vmem:[#allocation15] sm:$0xff]
        %v1079 = vld [vmem:[#allocation15 + $0x8] sm:$0xff]
        %v1080 = vld [vmem:[#allocation15 + $0x10] sm:$0xff]
        %v1081 = vld [vmem:[#allocation15 + $0x18] sm:$0xff]
        %v1082 = vld [vmem:[#allocation15 + $0x20] sm:$0xff]
        %v1083 = vld [vmem:[#allocation15 + $0x28] sm:$0xff]
        %v1084 = vld [vmem:[#allocation15 + $0x30] sm:$0xff]
        %v1085 = vld [vmem:[#allocation15 + $0x38] sm:$0xff]
        %v1086 = vld [vmem:[#allocation15 + $0x40] sm:$0xff]
        %v1087 = vld [vmem:[#allocation15 + $0x48] sm:$0xff]
        %v1088 = vld [vmem:[#allocation15 + $0x50] sm:$0xff]
        %v1089 = vld [vmem:[#allocation15 + $0x58] sm:$0xff]
        %v1090 = vld [vmem:[#allocation15 + $0x60] sm:$0xff]
        %v1091 = vld [vmem:[#allocation15 + $0x68] sm:$0xff]
        %v1092 = vld [vmem:[#allocation15 + $0x70] sm:$0xff]
        %v1093 = vld [vmem:[#allocation15 + $0x78] sm:$0xff]
        %v1094 = vld [vmem:[#allocation15 + $0x80] sm:$0xff]
        %v1095 = vld [vmem:[#allocation15 + $0x88] sm:$0xff]
        %v1096 = vld [vmem:[#allocation15 + $0x90] sm:$0xff]
        %v1097 = vld [vmem:[#allocation15 + $0x98] sm:$0xff]
        %v1098 = vld [vmem:[#allocation15 + $0xa0] sm:$0xff]
        %v1099 = vld [vmem:[#allocation15 + $0xa8] sm:$0xff]
        %v1100 = vld [vmem:[#allocation15 + $0xb0] sm:$0xff]
        %v1101 = vld [vmem:[#allocation15 + $0xb8] sm:$0xff]
        %v1102 = vld [vmem:[#allocation15 + $0xc0] sm:$0xff]
        %v1103 = vld [vmem:[#allocation15 + $0xc8] sm:$0xff]
        %v1104 = vld [vmem:[#allocation15 + $0xd0] sm:$0xff]
        %v1105 = vld [vmem:[#allocation15 + $0xd8] sm:$0xff]
        %v1106 = vld [vmem:[#allocation15 + $0xe0] sm:$0xff]
        %v1107 = vld [vmem:[#allocation15 + $0xe8] sm:$0xff]
        %v1108 = vld [vmem:[#allocation15 + $0xf0] sm:$0xff]
        %v1109 = vld [vmem:[#allocation15 + $0xf8] sm:$0xff]
        %v1110 = vld [vmem:[#allocation15 + $0x100] sm:$0xff]
        %v1111 = vld [vmem:[#allocation15 + $0x108] sm:$0xff]
        %v1112 = vld [vmem:[#allocation15 + $0x110] sm:$0xff]
        %v1113 = vld [vmem:[#allocation15 + $0x118] sm:$0xff]
        %v1114 = vld [vmem:[#allocation15 + $0x120] sm:$0xff]
        %v1115 = vld [vmem:[#allocation15 + $0x128] sm:$0xff]
        %v1116 = vld [vmem:[#allocation15 + $0x130] sm:$0xff]
        %v1117 = vld [vmem:[#allocation15 + $0x138] sm:$0xff]
        %v1118 = vld [vmem:[#allocation15 + $0x140] sm:$0xff]
        %v1119 = vld [vmem:[#allocation15 + $0x148] sm:$0xff]
        %v1120 = vld [vmem:[#allocation15 + $0x150] sm:$0xff]
        %v1121 = vld [vmem:[#allocation15 + $0x158] sm:$0xff]
        %v1122 = vld [vmem:[#allocation15 + $0x160] sm:$0xff]
        %v1123 = vld [vmem:[#allocation15 + $0x168] sm:$0xff]
        %v1124 = vld [vmem:[#allocation15 + $0x170] sm:$0xff]
        %v1125 = vld [vmem:[#allocation15 + $0x178] sm:$0xff]
        %v1126 = vld [vmem:[#allocation15 + $0x180] sm:$0xff]
        %v1127 = vld [vmem:[#allocation15 + $0x188] sm:$0xff]
        %v1128 = vld [vmem:[#allocation15 + $0x190] sm:$0xff]
        %v1129 = vld [vmem:[#allocation15 + $0x198] sm:$0xff]
        %v1130 = vld [vmem:[#allocation15 + $0x1a0] sm:$0xff]
        %v1131 = vld [vmem:[#allocation15 + $0x1a8] sm:$0xff]
        %v1132 = vld [vmem:[#allocation15 + $0x1b0] sm:$0xff]
        %v1133 = vld [vmem:[#allocation15 + $0x1b8] sm:$0xff]
        %v1134 = vld [vmem:[#allocation15 + $0x1c0] sm:$0xff]
        %v1135 = vld [vmem:[#allocation15 + $0x1c8] sm:$0xff]
        %v1136 = vld [vmem:[#allocation15 + $0x1d0] sm:$0xff]
        %v1137 = vld [vmem:[#allocation15 + $0x1d8] sm:$0xff]
        %v1138 = vld [vmem:[#allocation15 + $0x1e0] sm:$0xff]
        %v1139 = vld [vmem:[#allocation15 + $0x1e8] sm:$0xff]
        %v1140 = vld [vmem:[#allocation15 + $0x1f0] sm:$0xff]
        %v1141 = vld [vmem:[#allocation15 + $0x1f8] sm:$0xff]
        %v1142 = vld [vmem:[%s6] sm:$0xf]
        %v1144 = vperm.slane %v1142, 0
        %v1145 = vperm.slane %v1142, 1
        %v1146 = vperm.slane %v1142, 2
        %v1147 = vperm.slane %v1142, 3
        %1152 = vmatpush.msra.mxu0 %v1138
        %1153 = vmatpush.msra.mxu0 %v1134
        %1154 = vmatpush.msra.mxu0 %v1130
        %1155 = vmatpush.msra.mxu0 %v1126
        %1156 = vmatpush.msra.mxu0 %v1122
        %1157 = vmatpush.msra.mxu0 %v1118
        %1158 = vmatpush.msra.mxu0 %v1114
        %1159 = vmatpush.msra.mxu0 %v1110
        %1160 = vmatpush.msra.mxu0 %v1106
        %1161 = vmatpush.msra.mxu0 %v1102
        %1162 = vmatpush.msra.mxu0 %v1098
        %1163 = vmatpush.msra.mxu0 %v1094
        %1164 = vmatpush.msra.mxu0 %v1090
        %1165 = vmatpush.msra.mxu0 %v1086
        %1166 = vmatpush.msra.mxu0 %v1082
        %1167 = vmatpush.msra.mxu0 %v1078
        %1168 = vmatmul.f32.gmra.mxu0 %v1077
        %v1169 = vpop.f32.mrf.mxu0
        %v1170 = vadd.f32 %v1144, %v1169
        %1171 = vdwg.mxu0
        %1172 = vmatpush.msra.mxu0 %v1139
        %1173 = vmatpush.msra.mxu0 %v1135
        %1174 = vmatpush.msra.mxu0 %v1131
        %1175 = vmatpush.msra.mxu0 %v1127
        %1176 = vmatpush.msra.mxu0 %v1123
        %1177 = vmatpush.msra.mxu0 %v1119
        %1178 = vmatpush.msra.mxu0 %v1115
        %1179 = vmatpush.msra.mxu0 %v1111
        %1180 = vmatpush.msra.mxu0 %v1107
        %1181 = vmatpush.msra.mxu0 %v1103
        %1182 = vmatpush.msra.mxu0 %v1099
        %1183 = vmatpush.msra.mxu0 %v1095
        %1184 = vmatpush.msra.mxu0 %v1091
        %1185 = vmatpush.msra.mxu0 %v1087
        %1186 = vmatpush.msra.mxu0 %v1083
        %1187 = vmatpush.msra.mxu0 %v1079
        %1188 = vmatmul.f32.gmra.mxu0 %v1077
        %v1189 = vpop.f32.mrf.mxu0
        %v1190 = vadd.f32 %v1145, %v1189
        %1191 = vdwg.mxu0
        %1192 = vmatpush.msra.mxu0 %v1140
        %1193 = vmatpush.msra.mxu0 %v1136
        %1194 = vmatpush.msra.mxu0 %v1132
        %1195 = vmatpush.msra.mxu0 %v1128
        %1196 = vmatpush.msra.mxu0 %v1124
        %1197 = vmatpush.msra.mxu0 %v1120
        %1198 = vmatpush.msra.mxu0 %v1116
        %1199 = vmatpush.msra.mxu0 %v1112
        %1200 = vmatpush.msra.mxu0 %v1108
        %1201 = vmatpush.msra.mxu0 %v1104
        %1202 = vmatpush.msra.mxu0 %v1100
        %1203 = vmatpush.msra.mxu0 %v1096
        %1204 = vmatpush.msra.mxu0 %v1092
        %1205 = vmatpush.msra.mxu0 %v1088
        %1206 = vmatpush.msra.mxu0 %v1084
        %1207 = vmatpush.msra.mxu0 %v1080
        %1208 = vmatmul.f32.gmra.mxu0 %v1077
        %v1209 = vpop.f32.mrf.mxu0
        %v1210 = vadd.f32 %v1146, %v1209
        %1211 = vdwg.mxu0
        %1212 = vmatpush.msra.mxu0 %v1141
        %1213 = vmatpush.msra.mxu0 %v1137
        %1214 = vmatpush.msra.mxu0 %v1133
        %1215 = vmatpush.msra.mxu0 %v1129
        %1216 = vmatpush.msra.mxu0 %v1125
        %1217 = vmatpush.msra.mxu0 %v1121
        %1218 = vmatpush.msra.mxu0 %v1117
        %1219 = vmatpush.msra.mxu0 %v1113
        %1220 = vmatpush.msra.mxu0 %v1109
        %1221 = vmatpush.msra.mxu0 %v1105
        %1222 = vmatpush.msra.mxu0 %v1101
        %1223 = vmatpush.msra.mxu0 %v1097
        %1224 = vmatpush.msra.mxu0 %v1093
        %1225 = vmatpush.msra.mxu0 %v1089
        %1226 = vmatpush.msra.mxu0 %v1085
        %1227 = vmatpush.msra.mxu0 %v1081
        %1228 = vmatmul.f32.gmra.mxu0 %v1077
        %v1229 = vpop.f32.mrf.mxu0
        %v1230 = vadd.f32 %v1147, %v1229
        %1231 = vdwg.mxu0
        %v1232 = vld [vmem:[#allocation16] sm:$0xff]
        %v1233 = vld [vmem:[#allocation16 + $0x8] sm:$0xff]
        %v1234 = vld [vmem:[#allocation16 + $0x10] sm:$0xff]
        %v1235 = vld [vmem:[#allocation16 + $0x18] sm:$0xff]
        %v1236 = vld [vmem:[#allocation16 + $0x20] sm:$0xff]
        %v1237 = vld [vmem:[#allocation16 + $0x28] sm:$0xff]
        %v1238 = vld [vmem:[#allocation16 + $0x30] sm:$0xff]
        %v1239 = vld [vmem:[#allocation16 + $0x38] sm:$0xff]
        %v1240 = vld [vmem:[#allocation16 + $0x40] sm:$0xff]
        %v1241 = vld [vmem:[#allocation16 + $0x48] sm:$0xff]
        %v1242 = vld [vmem:[#allocation16 + $0x50] sm:$0xff]
        %v1243 = vld [vmem:[#allocation16 + $0x58] sm:$0xff]
        %v1244 = vld [vmem:[#allocation16 + $0x60] sm:$0xff]
        %v1245 = vld [vmem:[#allocation16 + $0x68] sm:$0xff]
        %v1246 = vld [vmem:[#allocation16 + $0x70] sm:$0xff]
        %v1247 = vld [vmem:[#allocation16 + $0x78] sm:$0xff]
        %v1248 = vld [vmem:[#allocation16 + $0x80] sm:$0xff]
        %v1249 = vld [vmem:[#allocation16 + $0x88] sm:$0xff]
        %v1250 = vld [vmem:[#allocation16 + $0x90] sm:$0xff]
        %v1251 = vld [vmem:[#allocation16 + $0x98] sm:$0xff]
        %v1252 = vld [vmem:[#allocation16 + $0xa0] sm:$0xff]
        %v1253 = vld [vmem:[#allocation16 + $0xa8] sm:$0xff]
        %v1254 = vld [vmem:[#allocation16 + $0xb0] sm:$0xff]
        %v1255 = vld [vmem:[#allocation16 + $0xb8] sm:$0xff]
        %v1256 = vld [vmem:[#allocation16 + $0xc0] sm:$0xff]
        %v1257 = vld [vmem:[#allocation16 + $0xc8] sm:$0xff]
        %v1258 = vld [vmem:[#allocation16 + $0xd0] sm:$0xff]
        %v1259 = vld [vmem:[#allocation16 + $0xd8] sm:$0xff]
        %v1260 = vld [vmem:[#allocation16 + $0xe0] sm:$0xff]
        %v1261 = vld [vmem:[#allocation16 + $0xe8] sm:$0xff]
        %v1262 = vld [vmem:[#allocation16 + $0xf0] sm:$0xff]
        %v1263 = vld [vmem:[#allocation16 + $0xf8] sm:$0xff]
        %v1264 = vld [vmem:[#allocation16 + $0x100] sm:$0xff]
        %v1265 = vld [vmem:[#allocation16 + $0x108] sm:$0xff]
        %v1266 = vld [vmem:[#allocation16 + $0x110] sm:$0xff]
        %v1267 = vld [vmem:[#allocation16 + $0x118] sm:$0xff]
        %v1268 = vld [vmem:[#allocation16 + $0x120] sm:$0xff]
        %v1269 = vld [vmem:[#allocation16 + $0x128] sm:$0xff]
        %v1270 = vld [vmem:[#allocation16 + $0x130] sm:$0xff]
        %v1271 = vld [vmem:[#allocation16 + $0x138] sm:$0xff]
        %v1272 = vld [vmem:[#allocation16 + $0x140] sm:$0xff]
        %v1273 = vld [vmem:[#allocation16 + $0x148] sm:$0xff]
        %v1274 = vld [vmem:[#allocation16 + $0x150] sm:$0xff]
        %v1275 = vld [vmem:[#allocation16 + $0x158] sm:$0xff]
        %v1276 = vld [vmem:[#allocation16 + $0x160] sm:$0xff]
        %v1277 = vld [vmem:[#allocation16 + $0x168] sm:$0xff]
        %v1278 = vld [vmem:[#allocation16 + $0x170] sm:$0xff]
        %v1279 = vld [vmem:[#allocation16 + $0x178] sm:$0xff]
        %v1280 = vld [vmem:[#allocation16 + $0x180] sm:$0xff]
        %v1281 = vld [vmem:[#allocation16 + $0x188] sm:$0xff]
        %v1282 = vld [vmem:[#allocation16 + $0x190] sm:$0xff]
        %v1283 = vld [vmem:[#allocation16 + $0x198] sm:$0xff]
        %v1284 = vld [vmem:[#allocation16 + $0x1a0] sm:$0xff]
        %v1285 = vld [vmem:[#allocation16 + $0x1a8] sm:$0xff]
        %v1286 = vld [vmem:[#allocation16 + $0x1b0] sm:$0xff]
        %v1287 = vld [vmem:[#allocation16 + $0x1b8] sm:$0xff]
        %v1288 = vld [vmem:[#allocation16 + $0x1c0] sm:$0xff]
        %v1289 = vld [vmem:[#allocation16 + $0x1c8] sm:$0xff]
        %v1290 = vld [vmem:[#allocation16 + $0x1d0] sm:$0xff]
        %v1291 = vld [vmem:[#allocation16 + $0x1d8] sm:$0xff]
        %v1292 = vld [vmem:[#allocation16 + $0x1e0] sm:$0xff]
        %v1293 = vld [vmem:[#allocation16 + $0x1e8] sm:$0xff]
        %v1294 = vld [vmem:[#allocation16 + $0x1f0] sm:$0xff]
        %v1295 = vld [vmem:[#allocation16 + $0x1f8] sm:$0xff]
        %v1296 = vld [vmem:[#allocation4] sm:$0x3]
        %v1297 = vld [vmem:[#allocation5] sm:$0x3]
        %1298 = vmatpush.msra.mxu0 %v1292
        %1299 = vmatpush.msra.mxu0 %v1288
        %1300 = vmatpush.msra.mxu0 %v1284
        %1301 = vmatpush.msra.mxu0 %v1280
        %1302 = vmatpush.msra.mxu0 %v1276
        %1303 = vmatpush.msra.mxu0 %v1272
        %1304 = vmatpush.msra.mxu0 %v1268
        %1305 = vmatpush.msra.mxu0 %v1264
        %1306 = vmatpush.msra.mxu0 %v1260
        %1307 = vmatpush.msra.mxu0 %v1256
        %1308 = vmatpush.msra.mxu0 %v1252
        %1309 = vmatpush.msra.mxu0 %v1248
        %1310 = vmatpush.msra.mxu0 %v1244
        %1311 = vmatpush.msra.mxu0 %v1240
        %1312 = vmatpush.msra.mxu0 %v1236
        %1313 = vmatpush.msra.mxu0 %v1232
        %1314 = vmatmul.f32.gmra.mxu0 %v1296
        %v1315 = vpop.f32.mrf.mxu0
        %v1316 = vadd.f32 0.0, %v1315
        %1317 = vdwg.mxu0
        %1318 = vmatpush.msra.mxu0 %v1293
        %1319 = vmatpush.msra.mxu0 %v1289
        %1320 = vmatpush.msra.mxu0 %v1285
        %1321 = vmatpush.msra.mxu0 %v1281
        %1322 = vmatpush.msra.mxu0 %v1277
        %1323 = vmatpush.msra.mxu0 %v1273
        %1324 = vmatpush.msra.mxu0 %v1269
        %1325 = vmatpush.msra.mxu0 %v1265
        %1326 = vmatpush.msra.mxu0 %v1261
        %1327 = vmatpush.msra.mxu0 %v1257
        %1328 = vmatpush.msra.mxu0 %v1253
        %1329 = vmatpush.msra.mxu0 %v1249
        %1330 = vmatpush.msra.mxu0 %v1245
        %1331 = vmatpush.msra.mxu0 %v1241
        %1332 = vmatpush.msra.mxu0 %v1237
        %1333 = vmatpush.msra.mxu0 %v1233
        %1334 = vmatmul.f32.gmra.mxu0 %v1296
        %v1335 = vpop.f32.mrf.mxu0
        %v1336 = vadd.f32 0.0, %v1335
        %1337 = vdwg.mxu0
        %1338 = vmatpush.msra.mxu0 %v1294
        %1339 = vmatpush.msra.mxu0 %v1290
        %1340 = vmatpush.msra.mxu0 %v1286
        %1341 = vmatpush.msra.mxu0 %v1282
        %1342 = vmatpush.msra.mxu0 %v1278
        %1343 = vmatpush.msra.mxu0 %v1274
        %1344 = vmatpush.msra.mxu0 %v1270
        %1345 = vmatpush.msra.mxu0 %v1266
        %1346 = vmatpush.msra.mxu0 %v1262
        %1347 = vmatpush.msra.mxu0 %v1258
        %1348 = vmatpush.msra.mxu0 %v1254
        %1349 = vmatpush.msra.mxu0 %v1250
        %1350 = vmatpush.msra.mxu0 %v1246
        %1351 = vmatpush.msra.mxu0 %v1242
        %1352 = vmatpush.msra.mxu0 %v1238
        %1353 = vmatpush.msra.mxu0 %v1234
        %1354 = vmatmul.f32.gmra.mxu0 %v1296
        %v1355 = vpop.f32.mrf.mxu0
        %v1356 = vadd.f32 0.0, %v1355
        %1357 = vdwg.mxu0
        %1358 = vmatpush.msra.mxu0 %v1295
        %1359 = vmatpush.msra.mxu0 %v1291
        %1360 = vmatpush.msra.mxu0 %v1287
        %1361 = vmatpush.msra.mxu0 %v1283
        %1362 = vmatpush.msra.mxu0 %v1279
        %1363 = vmatpush.msra.mxu0 %v1275
        %1364 = vmatpush.msra.mxu0 %v1271
        %1365 = vmatpush.msra.mxu0 %v1267
        %1366 = vmatpush.msra.mxu0 %v1263
        %1367 = vmatpush.msra.mxu0 %v1259
        %1368 = vmatpush.msra.mxu0 %v1255
        %1369 = vmatpush.msra.mxu0 %v1251
        %1370 = vmatpush.msra.mxu0 %v1247
        %1371 = vmatpush.msra.mxu0 %v1243
        %1372 = vmatpush.msra.mxu0 %v1239
        %1373 = vmatpush.msra.mxu0 %v1235
        %1374 = vmatmul.f32.gmra.mxu0 %v1296
        %v1375 = vpop.f32.mrf.mxu0
        %v1376 = vadd.f32 0.0, %v1375
        %1377 = vdwg.mxu0
        %v1378 = vadd.f32 %v1170, %v1316
        %v1379 = vadd.f32 %v1190, %v1336
        %v1380 = vadd.f32 %v1210, %v1356
        %v1381 = vadd.f32 %v1230, %v1376
        %v1382 = vmul.f32 %v1378, 0.5
        %v1383 = vtanh.pop %v1382
        %v1384 = vadd.f32 %v1383, 1.0
        %v1385 = vmul.f32 %v1384, 0.5
        %v1386 = vmul.f32 %v1379, 0.5
        %v1387 = vtanh.pop %v1386
        %v1388 = vadd.f32 %v1387, 1.0
        %v1389 = vmul.f32 %v1388, 0.5
        %v1390 = vtanh.pop %v1380
        %v1391 = vmul.f32 %v1381, 0.5
        %v1392 = vtanh.pop %v1391
        %v1393 = vadd.f32 %v1392, 1.0
        %v1394 = vmul.f32 %v1393, 0.5
        %v1395 = vmul.f32 %v1389, %v1297
        %v1396 = vmul.f32 %v1385, %v1390
        %v1397 = vadd.f32 %v1395, %v1396
        %v1398 = vtanh.pop %v1397
        %v1399 = vmul.f32 %v1394, %v1398
        %1400 = vmatpush.msra.mxu0 %v1292
        %1401 = vmatpush.msra.mxu0 %v1288
        %1402 = vmatpush.msra.mxu0 %v1284
        %1403 = vmatpush.msra.mxu0 %v1280
        %1404 = vmatpush.msra.mxu0 %v1276
        %1405 = vmatpush.msra.mxu0 %v1272
        %1406 = vmatpush.msra.mxu0 %v1268
        %1407 = vmatpush.msra.mxu0 %v1264
        %1408 = vmatpush.msra.mxu0 %v1260
        %1409 = vmatpush.msra.mxu0 %v1256
        %1410 = vmatpush.msra.mxu0 %v1252
        %1411 = vmatpush.msra.mxu0 %v1248
        %1412 = vmatpush.msra.mxu0 %v1244
        %1413 = vmatpush.msra.mxu0 %v1240
        %1414 = vmatpush.msra.mxu0 %v1236
        %1415 = vmatpush.msra.mxu0 %v1232
        %1416 = vmatmul.f32.gmra.mxu0 %v1399
        %v1417 = vpop.f32.mrf.mxu0
        %v1418 = vadd.f32 0.0, %v1417
        %1419 = vdwg.mxu0
        %1420 = vmatpush.msra.mxu0 %v1293
        %1421 = vmatpush.msra.mxu0 %v1289
        %1422 = vmatpush.msra.mxu0 %v1285
        %1423 = vmatpush.msra.mxu0 %v1281
        %1424 = vmatpush.msra.mxu0 %v1277
        %1425 = vmatpush.msra.mxu0 %v1273
        %1426 = vmatpush.msra.mxu0 %v1269
        %1427 = vmatpush.msra.mxu0 %v1265
        %1428 = vmatpush.msra.mxu0 %v1261
        %1429 = vmatpush.msra.mxu0 %v1257
        %1430 = vmatpush.msra.mxu0 %v1253
        %1431 = vmatpush.msra.mxu0 %v1249
        %1432 = vmatpush.msra.mxu0 %v1245
        %1433 = vmatpush.msra.mxu0 %v1241
        %1434 = vmatpush.msra.mxu0 %v1237
        %1435 = vmatpush.msra.mxu0 %v1233
        %1436 = vmatmul.f32.gmra.mxu0 %v1399
        %v1437 = vpop.f32.mrf.mxu0
        %v1438 = vadd.f32 0.0, %v1437
        %1439 = vdwg.mxu0
        %1440 = vmatpush.msra.mxu0 %v1294
        %1441 = vmatpush.msra.mxu0 %v1290
        %1442 = vmatpush.msra.mxu0 %v1286
        %1443 = vmatpush.msra.mxu0 %v1282
        %1444 = vmatpush.msra.mxu0 %v1278
        %1445 = vmatpush.msra.mxu0 %v1274
        %1446 = vmatpush.msra.mxu0 %v1270
        %1447 = vmatpush.msra.mxu0 %v1266
        %1448 = vmatpush.msra.mxu0 %v1262
        %1449 = vmatpush.msra.mxu0 %v1258
        %1450 = vmatpush.msra.mxu0 %v1254
        %1451 = vmatpush.msra.mxu0 %v1250
        %1452 = vmatpush.msra.mxu0 %v1246
        %1453 = vmatpush.msra.mxu0 %v1242
        %1454 = vmatpush.msra.mxu0 %v1238
        %1455 = vmatpush.msra.mxu0 %v1234
        %1456 = vmatmul.f32.gmra.mxu0 %v1399
        %v1457 = vpop.f32.mrf.mxu0
        %v1458 = vadd.f32 0.0, %v1457
        %1459 = vdwg.mxu0
        %1460 = vmatpush.msra.mxu0 %v1295
        %1461 = vmatpush.msra.mxu0 %v1291
        %1462 = vmatpush.msra.mxu0 %v1287
        %1463 = vmatpush.msra.mxu0 %v1283
        %1464 = vmatpush.msra.mxu0 %v1279
        %1465 = vmatpush.msra.mxu0 %v1275
        %1466 = vmatpush.msra.mxu0 %v1271
        %1467 = vmatpush.msra.mxu0 %v1267
        %1468 = vmatpush.msra.mxu0 %v1263
        %1469 = vmatpush.msra.mxu0 %v1259
        %1470 = vmatpush.msra.mxu0 %v1255
        %1471 = vmatpush.msra.mxu0 %v1251
        %1472 = vmatpush.msra.mxu0 %v1247
        %1473 = vmatpush.msra.mxu0 %v1243
        %1474 = vmatpush.msra.mxu0 %v1239
        %1475 = vmatpush.msra.mxu0 %v1235
        %1476 = vmatmul.f32.gmra.mxu0 %v1399
        %v1477 = vpop.f32.mrf.mxu0
        %v1478 = vadd.f32 0.0, %v1477
        %1479 = vdwg.mxu0
        %v1484 = vrot.slane %v1418, 6
        %v1485 = vrot.slane %v1438, 6
        %v1486 = vrot.slane %v1458, 6
        %v1487 = vrot.slane %v1478, 6
        %v1492 = vadd.f32 %v1170, %v1484
        %v1493 = vadd.f32 %v1190, %v1485
        %v1494 = vadd.f32 %v1210, %v1486
        %v1495 = vadd.f32 %v1230, %v1487
        %v1496 = vmul.f32 %v1492, 0.5
        %v1497 = vtanh.pop %v1496
        %v1498 = vadd.f32 %v1497, 1.0
        %v1499 = vmul.f32 %v1498, 0.5
        %v1500 = vmul.f32 %v1493, 0.5
        %v1501 = vtanh.pop %v1500
        %v1502 = vadd.f32 %v1501, 1.0
        %v1503 = vmul.f32 %v1502, 0.5
        %v1504 = vtanh.pop %v1494
        %v1505 = vmul.f32 %v1495, 0.5
        %v1506 = vtanh.pop %v1505
        %v1507 = vadd.f32 %v1506, 1.0
        %v1508 = vmul.f32 %v1507, 0.5
        %v1510 = vrot.slane %v1397, 6
        %v1512 = vmul.f32 %v1503, %v1510
        %v1513 = vmul.f32 %v1499, %v1504
        %v1514 = vadd.f32 %v1512, %v1513
        %v1515 = vtanh.pop %v1514
        %v1516 = vmul.f32 %v1508, %v1515
        %v1518 = vrot.slane %v1516, 2
        %1520 = vmatpush.msra.mxu0 %v1292
        %1521 = vmatpush.msra.mxu0 %v1288
        %1522 = vmatpush.msra.mxu0 %v1284
        %1523 = vmatpush.msra.mxu0 %v1280
        %1524 = vmatpush.msra.mxu0 %v1276
        %1525 = vmatpush.msra.mxu0 %v1272
        %1526 = vmatpush.msra.mxu0 %v1268
        %1527 = vmatpush.msra.mxu0 %v1264
        %1528 = vmatpush.msra.mxu0 %v1260
        %1529 = vmatpush.msra.mxu0 %v1256
        %1530 = vmatpush.msra.mxu0 %v1252
        %1531 = vmatpush.msra.mxu0 %v1248
        %1532 = vmatpush.msra.mxu0 %v1244
        %1533 = vmatpush.msra.mxu0 %v1240
        %1534 = vmatpush.msra.mxu0 %v1236
        %1535 = vmatpush.msra.mxu0 %v1232
        %1536 = vmatmul.f32.gmra.mxu0 %v1518
        %v1537 = vpop.f32.mrf.mxu0
        %v1538 = vadd.f32 0.0, %v1537
        %1539 = vdwg.mxu0
        %1540 = vmatpush.msra.mxu0 %v1293
        %1541 = vmatpush.msra.mxu0 %v1289
        %1542 = vmatpush.msra.mxu0 %v1285
        %1543 = vmatpush.msra.mxu0 %v1281
        %1544 = vmatpush.msra.mxu0 %v1277
        %1545 = vmatpush.msra.mxu0 %v1273
        %1546 = vmatpush.msra.mxu0 %v1269
        %1547 = vmatpush.msra.mxu0 %v1265
        %1548 = vmatpush.msra.mxu0 %v1261
        %1549 = vmatpush.msra.mxu0 %v1257
        %1550 = vmatpush.msra.mxu0 %v1253
        %1551 = vmatpush.msra.mxu0 %v1249
        %1552 = vmatpush.msra.mxu0 %v1245
        %1553 = vmatpush.msra.mxu0 %v1241
        %1554 = vmatpush.msra.mxu0 %v1237
        %1555 = vmatpush.msra.mxu0 %v1233
        %1556 = vmatmul.f32.gmra.mxu0 %v1518
        %v1557 = vpop.f32.mrf.mxu0
        %v1558 = vadd.f32 0.0, %v1557
        %1559 = vdwg.mxu0
        %1560 = vmatpush.msra.mxu0 %v1294
        %1561 = vmatpush.msra.mxu0 %v1290
        %1562 = vmatpush.msra.mxu0 %v1286
        %1563 = vmatpush.msra.mxu0 %v1282
        %1564 = vmatpush.msra.mxu0 %v1278
        %1565 = vmatpush.msra.mxu0 %v1274
        %1566 = vmatpush.msra.mxu0 %v1270
        %1567 = vmatpush.msra.mxu0 %v1266
        %1568 = vmatpush.msra.mxu0 %v1262
        %1569 = vmatpush.msra.mxu0 %v1258
        %1570 = vmatpush.msra.mxu0 %v1254
        %1571 = vmatpush.msra.mxu0 %v1250
        %1572 = vmatpush.msra.mxu0 %v1246
        %1573 = vmatpush.msra.mxu0 %v1242
        %1574 = vmatpush.msra.mxu0 %v1238
        %1575 = vmatpush.msra.mxu0 %v1234
        %1576 = vmatmul.f32.gmra.mxu0 %v1518
        %v1577 = vpop.f32.mrf.mxu0
        %v1578 = vadd.f32 0.0, %v1577
        %1579 = vdwg.mxu0
        %1580 = vmatpush.msra.mxu0 %v1295
        %1581 = vmatpush.msra.mxu0 %v1291
        %1582 = vmatpush.msra.mxu0 %v1287
        %1583 = vmatpush.msra.mxu0 %v1283
        %1584 = vmatpush.msra.mxu0 %v1279
        %1585 = vmatpush.msra.mxu0 %v1275
        %1586 = vmatpush.msra.mxu0 %v1271
        %1587 = vmatpush.msra.mxu0 %v1267
        %1588 = vmatpush.msra.mxu0 %v1263
        %1589 = vmatpush.msra.mxu0 %v1259
        %1590 = vmatpush.msra.mxu0 %v1255
        %1591 = vmatpush.msra.mxu0 %v1251
        %1592 = vmatpush.msra.mxu0 %v1247
        %1593 = vmatpush.msra.mxu0 %v1243
        %1594 = vmatpush.msra.mxu0 %v1239
        %1595 = vmatpush.msra.mxu0 %v1235
        %1596 = vmatmul.f32.gmra.mxu0 %v1518
        %v1597 = vpop.f32.mrf.mxu0
        %v1598 = vadd.f32 0.0, %v1597
        %1599 = vdwg.mxu0
        %v1604 = vrot.slane %v1538, 4
        %v1605 = vrot.slane %v1558, 4
        %v1606 = vrot.slane %v1578, 4
        %v1607 = vrot.slane %v1598, 4
        %v1612 = vadd.f32 %v1170, %v1604
        %v1613 = vadd.f32 %v1190, %v1605
        %v1614 = vadd.f32 %v1210, %v1606
        %v1615 = vadd.f32 %v1230, %v1607
        %v1616 = vmul.f32 %v1612, 0.5
        %v1617 = vtanh.pop %v1616
        %v1618 = vadd.f32 %v1617, 1.0
        %v1619 = vmul.f32 %v1618, 0.5
        %v1620 = vmul.f32 %v1613, 0.5
        %v1621 = vtanh.pop %v1620
        %v1622 = vadd.f32 %v1621, 1.0
        %v1623 = vmul.f32 %v1622, 0.5
        %v1624 = vtanh.pop %v1614
        %v1625 = vmul.f32 %v1615, 0.5
        %v1626 = vtanh.pop %v1625
        %v1627 = vadd.f32 %v1626, 1.0
        %v1628 = vmul.f32 %v1627, 0.5
        %v1630 = vrot.slane %v1514, 6
        %v1632 = vmul.f32 %v1623, %v1630
        %v1633 = vmul.f32 %v1619, %v1624
        %v1634 = vadd.f32 %v1632, %v1633
        %v1635 = vtanh.pop %v1634
        %v1636 = vmul.f32 %v1628, %v1635
        %v1638 = vrot.slane %v1636, 4
        %1640 = vmatpush.msra.mxu0 %v1292
        %1641 = vmatpush.msra.mxu0 %v1288
        %1642 = vmatpush.msra.mxu0 %v1284
        %1643 = vmatpush.msra.mxu0 %v1280
        %1644 = vmatpush.msra.mxu0 %v1276
        %1645 = vmatpush.msra.mxu0 %v1272
        %1646 = vmatpush.msra.mxu0 %v1268
        %1647 = vmatpush.msra.mxu0 %v1264
        %1648 = vmatpush.msra.mxu0 %v1260
        %1649 = vmatpush.msra.mxu0 %v1256
        %1650 = vmatpush.msra.mxu0 %v1252
        %1651 = vmatpush.msra.mxu0 %v1248
        %1652 = vmatpush.msra.mxu0 %v1244
        %1653 = vmatpush.msra.mxu0 %v1240
        %1654 = vmatpush.msra.mxu0 %v1236
        %1655 = vmatpush.msra.mxu0 %v1232
        %1656 = vmatmul.f32.gmra.mxu0 %v1638
        %v1657 = vpop.f32.mrf.mxu0
        %v1658 = vadd.f32 0.0, %v1657
        %1659 = vdwg.mxu0
        %1660 = vmatpush.msra.mxu0 %v1293
        %1661 = vmatpush.msra.mxu0 %v1289
        %1662 = vmatpush.msra.mxu0 %v1285
        %1663 = vmatpush.msra.mxu0 %v1281
        %1664 = vmatpush.msra.mxu0 %v1277
        %1665 = vmatpush.msra.mxu0 %v1273
        %1666 = vmatpush.msra.mxu0 %v1269
        %1667 = vmatpush.msra.mxu0 %v1265
        %1668 = vmatpush.msra.mxu0 %v1261
        %1669 = vmatpush.msra.mxu0 %v1257
        %1670 = vmatpush.msra.mxu0 %v1253
        %1671 = vmatpush.msra.mxu0 %v1249
        %1672 = vmatpush.msra.mxu0 %v1245
        %1673 = vmatpush.msra.mxu0 %v1241
        %1674 = vmatpush.msra.mxu0 %v1237
        %1675 = vmatpush.msra.mxu0 %v1233
        %1676 = vmatmul.f32.gmra.mxu0 %v1638
        %v1677 = vpop.f32.mrf.mxu0
        %v1678 = vadd.f32 0.0, %v1677
        %1679 = vdwg.mxu0
        %1680 = vmatpush.msra.mxu0 %v1294
        %1681 = vmatpush.msra.mxu0 %v1290
        %1682 = vmatpush.msra.mxu0 %v1286
        %1683 = vmatpush.msra.mxu0 %v1282
        %1684 = vmatpush.msra.mxu0 %v1278
        %1685 = vmatpush.msra.mxu0 %v1274
        %1686 = vmatpush.msra.mxu0 %v1270
        %1687 = vmatpush.msra.mxu0 %v1266
        %1688 = vmatpush.msra.mxu0 %v1262
        %1689 = vmatpush.msra.mxu0 %v1258
        %1690 = vmatpush.msra.mxu0 %v1254
        %1691 = vmatpush.msra.mxu0 %v1250
        %1692 = vmatpush.msra.mxu0 %v1246
        %1693 = vmatpush.msra.mxu0 %v1242
        %1694 = vmatpush.msra.mxu0 %v1238
        %1695 = vmatpush.msra.mxu0 %v1234
        %1696 = vmatmul.f32.gmra.mxu0 %v1638
        %v1697 = vpop.f32.mrf.mxu0
        %v1698 = vadd.f32 0.0, %v1697
        %1699 = vdwg.mxu0
        %1700 = vmatpush.msra.mxu0 %v1295
        %1701 = vmatpush.msra.mxu0 %v1291
        %1702 = vmatpush.msra.mxu0 %v1287
        %1703 = vmatpush.msra.mxu0 %v1283
        %1704 = vmatpush.msra.mxu0 %v1279
        %1705 = vmatpush.msra.mxu0 %v1275
        %1706 = vmatpush.msra.mxu0 %v1271
        %1707 = vmatpush.msra.mxu0 %v1267
        %1708 = vmatpush.msra.mxu0 %v1263
        %1709 = vmatpush.msra.mxu0 %v1259
        %1710 = vmatpush.msra.mxu0 %v1255
        %1711 = vmatpush.msra.mxu0 %v1251
        %1712 = vmatpush.msra.mxu0 %v1247
        %1713 = vmatpush.msra.mxu0 %v1243
        %1714 = vmatpush.msra.mxu0 %v1239
        %1715 = vmatpush.msra.mxu0 %v1235
        %1716 = vmatmul.f32.gmra.mxu0 %v1638
        %v1717 = vpop.f32.mrf.mxu0
        %v1718 = vadd.f32 0.0, %v1717
        %1719 = vdwg.mxu0
        %v1724 = vrot.slane %v1658, 2
        %v1725 = vrot.slane %v1678, 2
        %v1726 = vrot.slane %v1698, 2
        %v1727 = vrot.slane %v1718, 2
        %v1732 = vadd.f32 %v1170, %v1724
        %v1733 = vadd.f32 %v1190, %v1725
        %v1734 = vadd.f32 %v1210, %v1726
        %v1735 = vadd.f32 %v1230, %v1727
        %v1736 = vmul.f32 %v1732, 0.5
        %v1737 = vtanh.pop %v1736
        %v1738 = vadd.f32 %v1737, 1.0
        %v1739 = vmul.f32 %v1738, 0.5
        %v1740 = vmul.f32 %v1733, 0.5
        %v1741 = vtanh.pop %v1740
        %v1742 = vadd.f32 %v1741, 1.0
        %v1743 = vmul.f32 %v1742, 0.5
        %v1744 = vtanh.pop %v1734
        %v1745 = vmul.f32 %v1735, 0.5
        %v1746 = vtanh.pop %v1745
        %v1747 = vadd.f32 %v1746, 1.0
        %v1748 = vmul.f32 %v1747, 0.5
        %v1750 = vrot.slane %v1634, 6
        %v1752 = vmul.f32 %v1743, %v1750
        %v1753 = vmul.f32 %v1739, %v1744
        %v1754 = vadd.f32 %v1752, %v1753
        %v1755 = vtanh.pop %v1754
        %v1756 = vmul.f32 %v1748, %v1755
        %1757 = vst [vmem:[#allocation4 - $0x6] sm:$0xc0] %v1756
        %1758 = vst [vmem:[#allocation5 - $0x6] sm:$0xc0] %v1754
        %p1759 = scmp.eq.s32.totalorder %s27, 1
        // Predicated region
        $region89: #{tpu_custom_call.1} parent=55 // pred_check
          %p1760 = pneg %p1759
        $region90: #{tpu_custom_call.1} parent=55 // pred_check_branch
          %1762 = sbr.rel (%p1760) target = $region92
        $region91: #{tpu_custom_call.1} parent=55 // pred_region
          %v1763 = vld [vmem:[#allocation18] sm:$0xff]
          %v1764 = vld [vmem:[#allocation18 + $0x8] sm:$0xff]
          %v1765 = vld [vmem:[#allocation18 + $0x10] sm:$0xff]
          %v1766 = vld [vmem:[#allocation18 + $0x18] sm:$0xff]
          %v1767 = vld [vmem:[#allocation18 + $0x20] sm:$0xff]
          %v1768 = vld [vmem:[#allocation18 + $0x28] sm:$0xff]
          %v1769 = vld [vmem:[#allocation18 + $0x30] sm:$0xff]
          %v1770 = vld [vmem:[#allocation18 + $0x38] sm:$0xff]
          %v1771 = vld [vmem:[#allocation18 + $0x40] sm:$0xff]
          %v1772 = vld [vmem:[#allocation18 + $0x48] sm:$0xff]
          %v1773 = vld [vmem:[#allocation18 + $0x50] sm:$0xff]
          %v1774 = vld [vmem:[#allocation18 + $0x58] sm:$0xff]
          %v1775 = vld [vmem:[#allocation18 + $0x60] sm:$0xff]
          %v1776 = vld [vmem:[#allocation18 + $0x68] sm:$0xff]
          %v1777 = vld [vmem:[#allocation18 + $0x70] sm:$0xff]
          %v1778 = vld [vmem:[#allocation18 + $0x78] sm:$0xff]
          %v1779 = vld [vmem:[%s8] sm:$0x1]
          %v1781 = vperm.slane %v1779, 0
          %v1784 = vrot.slane %v1756, 6
          %1786 = vmatpush.msra.mxu0 %v1778
          %1787 = vmatpush.msra.mxu0 %v1777
          %1788 = vmatpush.msra.mxu0 %v1776
          %1789 = vmatpush.msra.mxu0 %v1775
          %1790 = vmatpush.msra.mxu0 %v1774
          %1791 = vmatpush.msra.mxu0 %v1773
          %1792 = vmatpush.msra.mxu0 %v1772
          %1793 = vmatpush.msra.mxu0 %v1771
          %1794 = vmatpush.msra.mxu0 %v1770
          %1795 = vmatpush.msra.mxu0 %v1769
          %1796 = vmatpush.msra.mxu0 %v1768
          %1797 = vmatpush.msra.mxu0 %v1767
          %1798 = vmatpush.msra.mxu0 %v1766
          %1799 = vmatpush.msra.mxu0 %v1765
          %1800 = vmatpush.msra.mxu0 %v1764
          %1801 = vmatpush.msra.mxu0 %v1763
          %1802 = vmatmul.f32.gmra.mxu0 %v1784
          %v1803 = vpop.f32.mrf.mxu0
          %v1804 = vadd.f32 %v1781, %v1803
          %1805 = vdwg.mxu0
          %v1806 = vlaneseq
          %v1807 = vand.u32 %v1806, 127
          %vm1808 = vcmp.lt.s32.totalorder %v1807, 3
          %v1809 = vsel %vm1808, %v1804, -1e+30
          %vm1810 = vcmask 1041408
          %v1811 = vsel %vm1810, %v1809, -inf
          %1812 = vmax.xlane.f32.xlu0 %v1811
          %v1813 = vpop.xlane.xlu0 %1812
          %v1814 = vsub.f32 %v1809, %v1813
          %v1815 = vmul.f32 %v1814, 1.442695
          %v1816 = vpow.pop %v1815
          %v1817 = vsel %vm1810, %v1816, 0.0
          %1818 = vadd.xlane.f32.xlu0 %v1817
          %v1819 = vpop.xlane.xlu0 %1818
          %v1820 = vlog2.pop %v1819
          %v1821 = vmul.f32 %v1820, 0.6931472
          %v1822 = vsub.f32 %v1814, %v1821
          %1823 = vst [vmem:[#allocation19] sm:$0x3] %v1822
        $region92: #{tpu_custom_call.1} parent=55 // pred_fallthru
          _
        // Predicated region
        $region93: #{tpu_custom_call.1} parent=55 // pred_check
          %p1824 = pneg %p234
        $region94: #{tpu_custom_call.1} parent=55 // pred_check_branch
          %1826 = sbr.rel (%p1824) target = $region96
        $region95: #{tpu_custom_call.1} parent=55 // pred_region
          %1828 = vsyncadd [#allocation9], 0
          %s1830 = sshll.u32 [#allocation19], 4
          %s1831 = int_to_ptr.vmem [resolvable:$true] %s1830
          %s1832 = sshll.u32 %s9, 4
          %s1833 = int_to_ptr.hbm [resolvable:$true] %s1832
          %1835 = dma.vmem_to_hbm [thread:$0]  %s1831, 32, %s1833, [#allocation9]
        $region96: #{tpu_custom_call.1} parent=55 // pred_fallthru
          _
        // Predicated region
        $region97: #{tpu_custom_call.1} parent=55 // pred_check
          %p1836 = pneg %p234
        $region98: #{tpu_custom_call.1} parent=55 // pred_check_branch
          %1838 = sbr.rel (%p1836) target = $region100
        $region99: #{tpu_custom_call.1} parent=55 // pred_region
          %1840 = dma.done [#allocation9], 32
        $region100: #{tpu_custom_call.1} parent=55 // pred_fallthru
          _
      $region56: #{tpu_custom_call.1} parent=5 // pred_fallthru
        _
      %p1841 = scmp.le.s32.totalorder 2, %s22
      // Predicated region
      $region101: #{tpu_custom_call.1} parent=5 // pred_check
        %p1842 = pneg %p1841
      $region102: #{tpu_custom_call.1} parent=5 // pred_check_branch
        %1844 = sbr.rel (%p1842) target = $region104
      $region103: #{tpu_custom_call.1} parent=5 // pred_region
        %s1845 = ssub.s32 %s22, 2
      $region104: #{tpu_custom_call.1} parent=5 // pred_fallthru
        _
    $region6: #{tpu_custom_call.1} parent=1 // loop_footer
      %s26 = sadd.s32 1, %s22
    $region7: #{tpu_custom_call.1} parent=1 // loop_footer_branch
      %21 = sbr.rel target = $region3
    $region8: #{tpu_custom_call.1} parent=1 // loop_exit
      _
    %1846 = vsyncpa [#allocation8], 1
    %s1847 = scalar_lea.sflag [#allocation8], 1
    %1848 = vsyncpa %s1847, 1
    %1849 = vsyncpa [#allocation11], 1
    %1850 = vsyncpa [#allocation14], 1
    %1851 = vsyncpa [#allocation17], 1
    %1852 = vsyncpa [#allocation9], 1
    %s1853 = scalar_lea.sflag [#allocation9], 1
    %1854 = vsyncpa %s1853, 1

</llo_original>
